<compile_context>
chip_gen: v6e
topology: v6e:2x2x1
jax: 0.10.0
libtpu: 0.0.40
codegen_flags: <defaults>
</compile_context>

<pallas_src>
import functools

import numpy as np
import jax
import jax.numpy as jnp
from jax import lax
from jax.experimental import pallas as pl
from jax.experimental.pallas import tpu as pltpu

KSIZE = 7
PAD = 3
EPS_IN = 1e-5  # nn.InstanceNorm2d default eps


def _build_masks(H, W):
    """(2*KSIZE, H*W) f32 boundary masks for the 7x7 conv on the row-major
    flattened spatial axis.

      rows [0, 7)  : column masks  mask[kw, p] = 1 iff 0 <= p%W  + (kw-PAD) < W
      rows [7, 14) : row masks     mask[kh, p] = 1 iff 0 <= p//W + (kh-PAD) < H
    """
    HW = H * W
    col = np.arange(HW, dtype=np.int64) % W
    row = np.arange(HW, dtype=np.int64) // W
    masks = np.zeros((2 * KSIZE, HW), dtype=np.float32)
    for k in range(KSIZE):
        d = k - PAD
        masks[k] = ((col + d >= 0) & (col + d < W)).astype(np.float32)
        masks[KSIZE + k] = ((row + d >= 0) & (row + d < H)).astype(np.float32)
    return masks


def _lane_shift(x, d, use_roll):
    """y[:, p] = x[:, p + d]. With use_roll the shift is circular on the XLU
    (wrapped lanes are zeroed by the caller's boundary mask); otherwise a
    slice+concat with explicit zero fill is used (non-128-aligned HW)."""
    HW = x.shape[-1]
    if d == 0:
        return x
    if abs(d) >= HW:
        return jnp.zeros_like(x)
    if use_roll:
        return pltpu.roll(x, (-d) % HW, axis=1)
    lead = x.shape[0]
    pad = jnp.zeros((lead, abs(d)), dtype=x.dtype)
    if d > 0:
        return jnp.concatenate([x[:, d:], pad], axis=1)
    return jnp.concatenate([pad, x[:, :HW + d]], axis=1)


def _fusion_kernel(wtap_ref,                        # SMEM (2*49,) conv taps [max | mean]
                   ir_ref, vi_ref,                  # VMEM (Bt, C, HW), caller dtype
                   mask_ref,                        # VMEM (2*KSIZE, HW) boundary masks
                   w1t_ref, b1_ref, w2t_ref, b2_ref,  # VMEM MLP params (f32)
                   out_ref,                         # VMEM (Bt, C, HW), caller dtype
                   *, W, use_roll):
    Bt, C, HW = ir_ref.shape
    R = 2 * Bt                                      # ir rows then vi rows
    inv_c = 1.0 / C
    inv_hw = 1.0 / HW

    # Single upcast right after the block load; everything inside runs in f32.
    ir = ir_ref[...].astype(jnp.float32)
    vi = vi_ref[...].astype(jnp.float32)

    # ChannelPool: per-pixel max / mean over channels, ir and vi stacked: (R, HW)
    xmax = jnp.concatenate([jnp.max(ir, axis=1), jnp.max(vi, axis=1)], axis=0)
    xmean = jnp.concatenate([jnp.sum(ir, axis=1), jnp.sum(vi, axis=1)],
                            axis=0) * inv_c

    # Direct 7x7 conv (2 -> 1 ch, zero pad 3) factored into horizontal pass
    # (per-kw masked lane shifts, accumulated into 7 per-kh sums) then a
    # vertical pass (per-kh masked row shifts).
    hsum = [None] * KSIZE
    for kw in range(KSIZE):
        dw = kw - PAD
        cmask = mask_ref[pl.ds(kw, 1), :]                         # (1, HW)
        xmax_s = cmask * _lane_shift(xmax, dw, use_roll)
        xmean_s = cmask * _lane_shift(xmean, dw, use_roll)
        for kh in range(KSIZE):
            t = kh * KSIZE + kw
            contrib = (wtap_ref[t] * xmax_s
                       + wtap_ref[KSIZE * KSIZE + t] * xmean_s)
            hsum[kh] = contrib if hsum[kh] is None else hsum[kh] + contrib
    conv = None
    for kh in range(KSIZE):
        dh = kh - PAD
        rmask = mask_ref[pl.ds(KSIZE + kh, 1), :]                 # (1, HW)
        term = rmask * _lane_shift(hsum[kh], dh * W, use_roll)
        conv = term if conv is None else conv + term

    # InstanceNorm2d(1, affine=False) over H*W per (sample, stream) + sigmoid
    m = jnp.sum(conv, axis=1, keepdims=True) * inv_hw
    cen = conv - m
    var = jnp.sum(cen * cen, axis=1, keepdims=True) * inv_hw
    scale = jax.nn.sigmoid(cen * lax.rsqrt(var + EPS_IN))         # (R, HW)
    scale_ir = scale[:Bt][:, None, :]                             # (Bt, 1, HW)
    scale_vi = scale[Bt:][:, None, :]

    # Global average pool of the gated maps as a fused multiply-reduce
    # (ir_s / vi_s never kept live), then both MLP evaluations in one pair of
    # small matmuls on the stacked (R, C) pool.
    pool = jnp.concatenate([jnp.sum(ir * scale_ir, axis=2),
                            jnp.sum(vi * scale_vi, axis=2)], axis=0) * inv_hw
    h = jnp.dot(pool, w1t_ref[...], preferred_element_type=jnp.float32) + b1_ref[...]
    h = jnp.maximum(h, 0.0)
    v = jnp.dot(h, w2t_ref[...], preferred_element_type=jnp.float32) + b2_ref[...]

    # CoupledWeight: 2-way softmax over {ir, vi} == sigmoid(ir_v - vi_v)
    w_ir = jax.nn.sigmoid(v[:Bt] - v[Bt:])[:, :, None]            # (Bt, C, 1)

    # Fused gated blend; single downcast at the store.
    out = ir * (w_ir * scale_ir) + vi * ((1.0 - w_ir) * scale_vi)
    out_ref[...] = out.astype(out_ref.dtype)


def _vmem_capacity_bytes():
    try:
        return int(pltpu.get_tpu_info().vmem_capacity_bytes)
    except Exception:
        return 64 * 1024 * 1024        # conservative floor: v7x per-TensorCore


def _per_sample_bytes(C, HW, itemsize):
    # 3 blocks (ir, vi, out) x double buffer in the caller dtype, ~7 full-size
    # f32 in-kernel temporaries (upcasts, gated products, blend) and ~14
    # (2, HW) f32 gate-stage temporaries per sample.
    return (3 * 2 * itemsize + 7 * 4) * C * HW + 14 * 2 * 4 * HW


def _choose_bt(B, C, HW, itemsize):
    """Largest per-step batch tile whose working set (double-buffered pipeline
    blocks + in-kernel f32 temporaries) fits this chip generation's VMEM."""
    cap = _vmem_capacity_bytes()
    budget = max(8 << 20, int(cap * 0.7) - (8 << 20))
    per_sample = _per_sample_bytes(C, HW, itemsize)
    bt = max(1, min(B, budget // per_sample))
    # Keep >= 2 grid steps when there is enough work to pipeline HBM DMA under
    # compute / shard across v7x's two TensorCores.
    if B >= 8 or (B >= 2 and bt * per_sample > (4 << 20)):
        bt = min(bt, pl.cdiv(B, 2))
    # 2*Bt multiple of 8 -> full sublane occupancy in the (2*Bt, HW) gate stage.
    if bt >= 4:
        bt = (bt // 4) * 4
    return int(max(1, min(bt, B)))


def fusion_block_pallas(ir, vi, wconv, w1, b1, w2, b2, *, block_b=None):
    B, C, H, W = ir.shape
    HW = H * W
    hid = w1.shape[0]
    dtype = ir.dtype
    itemsize = ir.dtype.itemsize
    Bt = block_b if block_b is not None else _choose_bt(B, C, HW, itemsize)
    grid_b = pl.cdiv(B, Bt)

    # Native-dtype I/O: no upcast at the boundary (bf16 stays bf16 on the wire).
    ir2 = ir.reshape(B, C, HW)
    vi2 = vi.reshape(B, C, HW)
    wtaps = wconv.reshape(2 * KSIZE * KSIZE).astype(jnp.float32)   # [max | mean]
    masks = jnp.asarray(_build_masks(H, W))
    w1t = w1.T.astype(jnp.float32)               # (C, hid)
    w2t = w2.T.astype(jnp.float32)               # (hid, C)
    b1r = b1.reshape(1, hid).astype(jnp.float32)
    b2r = b2.reshape(1, C).astype(jnp.float32)

    cap = _vmem_capacity_bytes()
    step_bytes = Bt * _per_sample_bytes(C, HW, itemsize) + 2 * KSIZE * HW * 4
    vmem_limit = int(min(cap, max(step_bytes + (4 << 20), 16 << 20)))

    cost = pl.CostEstimate(
        flops=int(B * (4 * KSIZE * KSIZE * HW + 16 * C * HW + 8 * C * hid)),
        transcendentals=int(B * (2 * HW + 2 * C)),
        bytes_accessed=int(3 * B * C * HW * itemsize),
    )

    use_roll = (HW % 128 == 0)
    kernel = functools.partial(_fusion_kernel, W=W, use_roll=use_roll)

    # TODO(synk): if HW is not a 128-multiple, present a lane-dense (B, C*HW)
    # output slab (and pad) instead, to avoid masked vst partial stores.
    out2 = pl.pallas_call(
        kernel,
        out_shape=jax.ShapeDtypeStruct((B, C, HW), dtype),
        grid_spec=pltpu.PrefetchScalarGridSpec(
            num_scalar_prefetch=1,                       # conv taps -> SMEM
            grid=(grid_b,),
            in_specs=[
                pl.BlockSpec((Bt, C, HW), lambda b, taps: (b, 0, 0)),   # ir
                pl.BlockSpec((Bt, C, HW), lambda b, taps: (b, 0, 0)),   # vi
                pl.BlockSpec((2 * KSIZE, HW), lambda b, taps: (0, 0)),  # masks
                pl.BlockSpec((C, hid), lambda b, taps: (0, 0)),         # W1^T
                pl.BlockSpec((1, hid), lambda b, taps: (0, 0)),         # b1
                pl.BlockSpec((hid, C), lambda b, taps: (0, 0)),         # W2^T
                pl.BlockSpec((1, C), lambda b, taps: (0, 0)),           # b2
            ],
            out_specs=pl.BlockSpec((Bt, C, HW), lambda b, taps: (b, 0, 0)),
        ),
        compiler_params=pltpu.CompilerParams(
            dimension_semantics=("parallel",),
            vmem_limit_bytes=vmem_limit,
        ),
        cost_estimate=cost,
    )(wtaps, ir2, vi2, masks, w1t, b1r, w2t, b2r)
    return out2.reshape(B, C, H, W)


def fusion_block_reference(ir, vi, wconv, w1, b1, w2, b2):
    """Pure-JAX reference matching the PyTorch forward semantics."""
    hp = lax.Precision.HIGHEST

    def spatial_gate(x):
        cmax = jnp.max(x, axis=1, keepdims=True)
        cmean = jnp.mean(x, axis=1, keepdims=True)
        comp = jnp.concatenate([cmax, cmean], axis=1)               # (B,2,H,W)
        conv = lax.conv_general_dilated(
            comp, wconv, window_strides=(1, 1),
            padding=((PAD, PAD), (PAD, PAD)),
            dimension_numbers=("NCHW", "OIHW", "NCHW"), precision=hp)
        m = jnp.mean(conv, axis=(2, 3), keepdims=True)
        v = jnp.mean((conv - m) ** 2, axis=(2, 3), keepdims=True)
        scale = jax.nn.sigmoid((conv - m) / jnp.sqrt(v + EPS_IN))
        return x * scale

    ir_s = spatial_gate(ir)
    vi_s = spatial_gate(vi)

    def mlp(xs):
        p = jnp.mean(xs, axis=(2, 3))                               # (B, C)
        h = jnp.maximum(jnp.dot(p, w1.T, precision=hp) + b1, 0.0)
        return jnp.dot(h, w2.T, precision=hp) + b2

    ir_v = mlp(ir_s)
    vi_v = mlp(vi_s)
    w_ir = jax.nn.sigmoid(ir_v - vi_v)[:, :, None, None]
    return w_ir * ir_s + (1.0 - w_ir) * vi_s


if __name__ == "__main__":
    B, C, H, W = 2, 32, 16, 16        # gate_channels = 32
    reduction_ratio = 8
    hid = C // reduction_ratio

    key = jax.random.PRNGKey(0)
    k_ir, k_vi, k_conv, k_w1, k_b1, k_w2, k_b2 = jax.random.split(key, 7)

    ir = jax.random.normal(k_ir, (B, C, H, W), jnp.float32)
    vi = jax.random.normal(k_vi, (B, C, H, W), jnp.float32)

    # Deterministic synthetic parameters (shapes from the module __init__)
    wconv = jax.random.normal(k_conv, (1, 2, KSIZE, KSIZE), jnp.float32) * 0.1
    w1 = jax.random.normal(k_w1, (hid, C), jnp.float32) * (1.0 / np.sqrt(C))
    b1 = jax.random.normal(k_b1, (hid,), jnp.float32) * 0.05
    w2 = jax.random.normal(k_w2, (C, hid), jnp.float32) * (1.0 / np.sqrt(hid))
    b2 = jax.random.normal(k_b2, (C,), jnp.float32) * 0.05

    out = jax.block_until_ready(fusion_block_pallas(ir, vi, wconv, w1, b1, w2, b2))
    ref = jax.block_until_ready(fusion_block_reference(ir, vi, wconv, w1, b1, w2, b2))

    assert out.shape == (B, C, H, W)
    np.testing.assert_allclose(np.asarray(out), np.asarray(ref), rtol=1e-2, atol=1e-2)

    print("KERNEL_OK")
</pallas_src>

<mosaic_0001>
module attributes {stable_mosaic.version = 11 : i64} {
  func.func @_fusion_kernel(%arg0: i32, %arg1: memref<98xf32, #tpu.memory_space<smem>>, %arg2: memref<2x32x256xf32, #tpu.memory_space<vmem>>, %arg3: memref<2x32x256xf32, #tpu.memory_space<vmem>>, %arg4: memref<14x256xf32, #tpu.memory_space<vmem>>, %arg5: memref<32x4xf32, #tpu.memory_space<vmem>>, %arg6: memref<1x4xf32, #tpu.memory_space<vmem>>, %arg7: memref<4x32xf32, #tpu.memory_space<vmem>>, %arg8: memref<1x32xf32, #tpu.memory_space<vmem>>, %arg9: memref<2x32x256xf32, #tpu.memory_space<vmem>>) attributes {dimension_semantics = [#tpu.dimension_semantics<parallel>], iteration_bounds = array<i64: 1>, scalar_prefetch = 1 : i64, scratch_operands = 0 : i64, tpu.core_type = #tpu.core_type<tc>, window_params = [{transform_indices = @transform_0, window_bounds = array<i64: 2, 32, 256>}, {transform_indices = @transform_1, window_bounds = array<i64: 2, 32, 256>}, {pipeline_mode = #tpu.pipeline_mode<synchronous>, transform_indices = @transform_2, window_bounds = array<i64: 14, 256>}, {pipeline_mode = #tpu.pipeline_mode<synchronous>, transform_indices = @transform_3, window_bounds = array<i64: 32, 4>}, {pipeline_mode = #tpu.pipeline_mode<synchronous>, transform_indices = @transform_4, window_bounds = array<i64: 1, 4>}, {pipeline_mode = #tpu.pipeline_mode<synchronous>, transform_indices = @transform_5, window_bounds = array<i64: 4, 32>}, {pipeline_mode = #tpu.pipeline_mode<synchronous>, transform_indices = @transform_6, window_bounds = array<i64: 1, 32>}, {transform_indices = @transform_7, window_bounds = array<i64: 2, 32, 256>}]} {
    %c0 = arith.constant 0 : index
    %c0_0 = arith.constant 0 : index
    %c0_1 = arith.constant 0 : index
    %0 = vector.load %arg2[%c0, %c0_0, %c0_1] : memref<2x32x256xf32, #tpu.memory_space<vmem>>, vector<2x32x256xf32>
    %c0_2 = arith.constant 0 : index
    %c0_3 = arith.constant 0 : index
    %c0_4 = arith.constant 0 : index
    %1 = vector.load %arg3[%c0_2, %c0_3, %c0_4] : memref<2x32x256xf32, #tpu.memory_space<vmem>>, vector<2x32x256xf32>
    %cst = arith.constant dense<0xFF800000> : vector<2x256xf32>
    %2 = vector.multi_reduction <maximumf>, %0, %cst [1] : vector<2x32x256xf32> to vector<2x256xf32>
    %cst_5 = arith.constant dense<0xFF800000> : vector<2x256xf32>
    %3 = vector.multi_reduction <maximumf>, %1, %cst_5 [1] : vector<2x32x256xf32> to vector<2x256xf32>
    %4 = tpu.concatenate %2, %3 in 0 : vector<2x256xf32>, vector<2x256xf32> -> vector<4x256xf32>
    %cst_6 = arith.constant dense<0.000000e+00> : vector<2x256xf32>
    %5 = vector.multi_reduction <add>, %0, %cst_6 [1] : vector<2x32x256xf32> to vector<2x256xf32>
    %cst_7 = arith.constant dense<0.000000e+00> : vector<2x256xf32>
    %6 = vector.multi_reduction <add>, %1, %cst_7 [1] : vector<2x32x256xf32> to vector<2x256xf32>
    %7 = tpu.concatenate %5, %6 in 0 : vector<2x256xf32>, vector<2x256xf32> -> vector<4x256xf32>
    %cst_8 = arith.constant 3.125000e-02 : f32
    %8 = vector.broadcast %cst_8 : f32 to vector<4x256xf32>
    %9 = arith.mulf %7, %8 : vector<4x256xf32>
    %c0_9 = arith.constant 0 : index
    %c0_10 = arith.constant 0 : index
    %10 = vector.load %arg4[%c0_9, %c0_10] : memref<14x256xf32, #tpu.memory_space<vmem>>, vector<1x256xf32>
    %c3_i32 = arith.constant 3 : i32
    %11 = tpu.dynamic_rotate %4 by %c3_i32 dim 1 : vector<4x256xf32>, i32 -> vector<4x256xf32>
    %12 = vector.broadcast %10 : vector<1x256xf32> to vector<4x256xf32>
    %13 = arith.mulf %12, %11 : vector<4x256xf32>
    %c3_i32_11 = arith.constant 3 : i32
    %14 = tpu.dynamic_rotate %9 by %c3_i32_11 dim 1 : vector<4x256xf32>, i32 -> vector<4x256xf32>
    %15 = vector.broadcast %10 : vector<1x256xf32> to vector<4x256xf32>
    %16 = arith.mulf %15, %14 : vector<4x256xf32>
    %c0_12 = arith.constant 0 : index
    %17 = memref.load %arg1[%c0_12] : memref<98xf32, #tpu.memory_space<smem>>
    %18 = vector.broadcast %17 : f32 to vector<4x256xf32>
    %19 = arith.mulf %18, %13 : vector<4x256xf32>
    %c49 = arith.constant 49 : index
    %20 = memref.load %arg1[%c49] : memref<98xf32, #tpu.memory_space<smem>>
    %21 = vector.broadcast %20 : f32 to vector<4x256xf32>
    %22 = arith.mulf %21, %16 : vector<4x256xf32>
    %23 = arith.addf %19, %22 : vector<4x256xf32>
    %c7 = arith.constant 7 : index
    %24 = memref.load %arg1[%c7] : memref<98xf32, #tpu.memory_space<smem>>
    %25 = vector.broadcast %24 : f32 to vector<4x256xf32>
    %26 = arith.mulf %25, %13 : vector<4x256xf32>
    %c56 = arith.constant 56 : index
    %27 = memref.load %arg1[%c56] : memref<98xf32, #tpu.memory_space<smem>>
    %28 = vector.broadcast %27 : f32 to vector<4x256xf32>
    %29 = arith.mulf %28, %16 : vector<4x256xf32>
    %30 = arith.addf %26, %29 : vector<4x256xf32>
    %c14 = arith.constant 14 : index
    %31 = memref.load %arg1[%c14] : memref<98xf32, #tpu.memory_space<smem>>
    %32 = vector.broadcast %31 : f32 to vector<4x256xf32>
    %33 = arith.mulf %32, %13 : vector<4x256xf32>
    %c63 = arith.constant 63 : index
    %34 = memref.load %arg1[%c63] : memref<98xf32, #tpu.memory_space<smem>>
    %35 = vector.broadcast %34 : f32 to vector<4x256xf32>
    %36 = arith.mulf %35, %16 : vector<4x256xf32>
    %37 = arith.addf %33, %36 : vector<4x256xf32>
    %c21 = arith.constant 21 : index
    %38 = memref.load %arg1[%c21] : memref<98xf32, #tpu.memory_space<smem>>
    %39 = vector.broadcast %38 : f32 to vector<4x256xf32>
    %40 = arith.mulf %39, %13 : vector<4x256xf32>
    %c70 = arith.constant 70 : index
    %41 = memref.load %arg1[%c70] : memref<98xf32, #tpu.memory_space<smem>>
    %42 = vector.broadcast %41 : f32 to vector<4x256xf32>
    %43 = arith.mulf %42, %16 : vector<4x256xf32>
    %44 = arith.addf %40, %43 : vector<4x256xf32>
    %c28 = arith.constant 28 : index
    %45 = memref.load %arg1[%c28] : memref<98xf32, #tpu.memory_space<smem>>
    %46 = vector.broadcast %45 : f32 to vector<4x256xf32>
    %47 = arith.mulf %46, %13 : vector<4x256xf32>
    %c77 = arith.constant 77 : index
    %48 = memref.load %arg1[%c77] : memref<98xf32, #tpu.memory_space<smem>>
    %49 = vector.broadcast %48 : f32 to vector<4x256xf32>
    %50 = arith.mulf %49, %16 : vector<4x256xf32>
    %51 = arith.addf %47, %50 : vector<4x256xf32>
    %c35 = arith.constant 35 : index
    %52 = memref.load %arg1[%c35] : memref<98xf32, #tpu.memory_space<smem>>
    %53 = vector.broadcast %52 : f32 to vector<4x256xf32>
    %54 = arith.mulf %53, %13 : vector<4x256xf32>
    %c84 = arith.constant 84 : index
    %55 = memref.load %arg1[%c84] : memref<98xf32, #tpu.memory_space<smem>>
    %56 = vector.broadcast %55 : f32 to vector<4x256xf32>
    %57 = arith.mulf %56, %16 : vector<4x256xf32>
    %58 = arith.addf %54, %57 : vector<4x256xf32>
    %c42 = arith.constant 42 : index
    %59 = memref.load %arg1[%c42] : memref<98xf32, #tpu.memory_space<smem>>
    %60 = vector.broadcast %59 : f32 to vector<4x256xf32>
    %61 = arith.mulf %60, %13 : vector<4x256xf32>
    %c91 = arith.constant 91 : index
    %62 = memref.load %arg1[%c91] : memref<98xf32, #tpu.memory_space<smem>>
    %63 = vector.broadcast %62 : f32 to vector<4x256xf32>
    %64 = arith.mulf %63, %16 : vector<4x256xf32>
    %65 = arith.addf %61, %64 : vector<4x256xf32>
    %c1 = arith.constant 1 : index
    %c0_13 = arith.constant 0 : index
    %66 = vector.load %arg4[%c1, %c0_13] : memref<14x256xf32, #tpu.memory_space<vmem>>, vector<1x256xf32>
    %c2_i32 = arith.constant 2 : i32
    %67 = tpu.dynamic_rotate %4 by %c2_i32 dim 1 : vector<4x256xf32>, i32 -> vector<4x256xf32>
    %68 = vector.broadcast %66 : vector<1x256xf32> to vector<4x256xf32>
    %69 = arith.mulf %68, %67 : vector<4x256xf32>
    %c2_i32_14 = arith.constant 2 : i32
    %70 = tpu.dynamic_rotate %9 by %c2_i32_14 dim 1 : vector<4x256xf32>, i32 -> vector<4x256xf32>
    %71 = vector.broadcast %66 : vector<1x256xf32> to vector<4x256xf32>
    %72 = arith.mulf %71, %70 : vector<4x256xf32>
    %c1_15 = arith.constant 1 : index
    %73 = memref.load %arg1[%c1_15] : memref<98xf32, #tpu.memory_space<smem>>
    %74 = vector.broadcast %73 : f32 to vector<4x256xf32>
    %75 = arith.mulf %74, %69 : vector<4x256xf32>
    %c50 = arith.constant 50 : index
    %76 = memref.load %arg1[%c50] : memref<98xf32, #tpu.memory_space<smem>>
    %77 = vector.broadcast %76 : f32 to vector<4x256xf32>
    %78 = arith.mulf %77, %72 : vector<4x256xf32>
    %79 = arith.addf %75, %78 : vector<4x256xf32>
    %80 = arith.addf %23, %79 : vector<4x256xf32>
    %c8 = arith.constant 8 : index
    %81 = memref.load %arg1[%c8] : memref<98xf32, #tpu.memory_space<smem>>
    %82 = vector.broadcast %81 : f32 to vector<4x256xf32>
    %83 = arith.mulf %82, %69 : vector<4x256xf32>
    %c57 = arith.constant 57 : index
    %84 = memref.load %arg1[%c57] : memref<98xf32, #tpu.memory_space<smem>>
    %85 = vector.broadcast %84 : f32 to vector<4x256xf32>
    %86 = arith.mulf %85, %72 : vector<4x256xf32>
    %87 = arith.addf %83, %86 : vector<4x256xf32>
    %88 = arith.addf %30, %87 : vector<4x256xf32>
    %c15 = arith.constant 15 : index
    %89 = memref.load %arg1[%c15] : memref<98xf32, #tpu.memory_space<smem>>
    %90 = vector.broadcast %89 : f32 to vector<4x256xf32>
    %91 = arith.mulf %90, %69 : vector<4x256xf32>
    %c64 = arith.constant 64 : index
    %92 = memref.load %arg1[%c64] : memref<98xf32, #tpu.memory_space<smem>>
    %93 = vector.broadcast %92 : f32 to vector<4x256xf32>
    %94 = arith.mulf %93, %72 : vector<4x256xf32>
    %95 = arith.addf %91, %94 : vector<4x256xf32>
    %96 = arith.addf %37, %95 : vector<4x256xf32>
    %c22 = arith.constant 22 : index
    %97 = memref.load %arg1[%c22] : memref<98xf32, #tpu.memory_space<smem>>
    %98 = vector.broadcast %97 : f32 to vector<4x256xf32>
    %99 = arith.mulf %98, %69 : vector<4x256xf32>
    %c71 = arith.constant 71 : index
    %100 = memref.load %arg1[%c71] : memref<98xf32, #tpu.memory_space<smem>>
    %101 = vector.broadcast %100 : f32 to vector<4x256xf32>
    %102 = arith.mulf %101, %72 : vector<4x256xf32>
    %103 = arith.addf %99, %102 : vector<4x256xf32>
    %104 = arith.addf %44, %103 : vector<4x256xf32>
    %c29 = arith.constant 29 : index
    %105 = memref.load %arg1[%c29] : memref<98xf32, #tpu.memory_space<smem>>
    %106 = vector.broadcast %105 : f32 to vector<4x256xf32>
    %107 = arith.mulf %106, %69 : vector<4x256xf32>
    %c78 = arith.constant 78 : index
    %108 = memref.load %arg1[%c78] : memref<98xf32, #tpu.memory_space<smem>>
    %109 = vector.broadcast %108 : f32 to vector<4x256xf32>
    %110 = arith.mulf %109, %72 : vector<4x256xf32>
    %111 = arith.addf %107, %110 : vector<4x256xf32>
    %112 = arith.addf %51, %111 : vector<4x256xf32>
    %c36 = arith.constant 36 : index
    %113 = memref.load %arg1[%c36] : memref<98xf32, #tpu.memory_space<smem>>
    %114 = vector.broadcast %113 : f32 to vector<4x256xf32>
    %115 = arith.mulf %114, %69 : vector<4x256xf32>
    %c85 = arith.constant 85 : index
    %116 = memref.load %arg1[%c85] : memref<98xf32, #tpu.memory_space<smem>>
    %117 = vector.broadcast %116 : f32 to vector<4x256xf32>
    %118 = arith.mulf %117, %72 : vector<4x256xf32>
    %119 = arith.addf %115, %118 : vector<4x256xf32>
    %120 = arith.addf %58, %119 : vector<4x256xf32>
    %c43 = arith.constant 43 : index
    %121 = memref.load %arg1[%c43] : memref<98xf32, #tpu.memory_space<smem>>
    %122 = vector.broadcast %121 : f32 to vector<4x256xf32>
    %123 = arith.mulf %122, %69 : vector<4x256xf32>
    %c92 = arith.constant 92 : index
    %124 = memref.load %arg1[%c92] : memref<98xf32, #tpu.memory_space<smem>>
    %125 = vector.broadcast %124 : f32 to vector<4x256xf32>
    %126 = arith.mulf %125, %72 : vector<4x256xf32>
    %127 = arith.addf %123, %126 : vector<4x256xf32>
    %128 = arith.addf %65, %127 : vector<4x256xf32>
    %c2 = arith.constant 2 : index
    %c0_16 = arith.constant 0 : index
    %129 = vector.load %arg4[%c2, %c0_16] : memref<14x256xf32, #tpu.memory_space<vmem>>, vector<1x256xf32>
    %c1_i32 = arith.constant 1 : i32
    %130 = tpu.dynamic_rotate %4 by %c1_i32 dim 1 : vector<4x256xf32>, i32 -> vector<4x256xf32>
    %131 = vector.broadcast %129 : vector<1x256xf32> to vector<4x256xf32>
    %132 = arith.mulf %131, %130 : vector<4x256xf32>
    %c1_i32_17 = arith.constant 1 : i32
    %133 = tpu.dynamic_rotate %9 by %c1_i32_17 dim 1 : vector<4x256xf32>, i32 -> vector<4x256xf32>
    %134 = vector.broadcast %129 : vector<1x256xf32> to vector<4x256xf32>
    %135 = arith.mulf %134, %133 : vector<4x256xf32>
    %c2_18 = arith.constant 2 : index
    %136 = memref.load %arg1[%c2_18] : memref<98xf32, #tpu.memory_space<smem>>
    %137 = vector.broadcast %136 : f32 to vector<4x256xf32>
    %138 = arith.mulf %137, %132 : vector<4x256xf32>
    %c51 = arith.constant 51 : index
    %139 = memref.load %arg1[%c51] : memref<98xf32, #tpu.memory_space<smem>>
    %140 = vector.broadcast %139 : f32 to vector<4x256xf32>
    %141 = arith.mulf %140, %135 : vector<4x256xf32>
    %142 = arith.addf %138, %141 : vector<4x256xf32>
    %143 = arith.addf %80, %142 : vector<4x256xf32>
    %c9 = arith.constant 9 : index
    %144 = memref.load %arg1[%c9] : memref<98xf32, #tpu.memory_space<smem>>
    %145 = vector.broadcast %144 : f32 to vector<4x256xf32>
    %146 = arith.mulf %145, %132 : vector<4x256xf32>
    %c58 = arith.constant 58 : index
    %147 = memref.load %arg1[%c58] : memref<98xf32, #tpu.memory_space<smem>>
    %148 = vector.broadcast %147 : f32 to vector<4x256xf32>
    %149 = arith.mulf %148, %135 : vector<4x256xf32>
    %150 = arith.addf %146, %149 : vector<4x256xf32>
    %151 = arith.addf %88, %150 : vector<4x256xf32>
    %c16 = arith.constant 16 : index
    %152 = memref.load %arg1[%c16] : memref<98xf32, #tpu.memory_space<smem>>
    %153 = vector.broadcast %152 : f32 to vector<4x256xf32>
    %154 = arith.mulf %153, %132 : vector<4x256xf32>
    %c65 = arith.constant 65 : index
    %155 = memref.load %arg1[%c65] : memref<98xf32, #tpu.memory_space<smem>>
    %156 = vector.broadcast %155 : f32 to vector<4x256xf32>
    %157 = arith.mulf %156, %135 : vector<4x256xf32>
    %158 = arith.addf %154, %157 : vector<4x256xf32>
    %159 = arith.addf %96, %158 : vector<4x256xf32>
    %c23 = arith.constant 23 : index
    %160 = memref.load %arg1[%c23] : memref<98xf32, #tpu.memory_space<smem>>
    %161 = vector.broadcast %160 : f32 to vector<4x256xf32>
    %162 = arith.mulf %161, %132 : vector<4x256xf32>
    %c72 = arith.constant 72 : index
    %163 = memref.load %arg1[%c72] : memref<98xf32, #tpu.memory_space<smem>>
    %164 = vector.broadcast %163 : f32 to vector<4x256xf32>
    %165 = arith.mulf %164, %135 : vector<4x256xf32>
    %166 = arith.addf %162, %165 : vector<4x256xf32>
    %167 = arith.addf %104, %166 : vector<4x256xf32>
    %c30 = arith.constant 30 : index
    %168 = memref.load %arg1[%c30] : memref<98xf32, #tpu.memory_space<smem>>
    %169 = vector.broadcast %168 : f32 to vector<4x256xf32>
    %170 = arith.mulf %169, %132 : vector<4x256xf32>
    %c79 = arith.constant 79 : index
    %171 = memref.load %arg1[%c79] : memref<98xf32, #tpu.memory_space<smem>>
    %172 = vector.broadcast %171 : f32 to vector<4x256xf32>
    %173 = arith.mulf %172, %135 : vector<4x256xf32>
    %174 = arith.addf %170, %173 : vector<4x256xf32>
    %175 = arith.addf %112, %174 : vector<4x256xf32>
    %c37 = arith.constant 37 : index
    %176 = memref.load %arg1[%c37] : memref<98xf32, #tpu.memory_space<smem>>
    %177 = vector.broadcast %176 : f32 to vector<4x256xf32>
    %178 = arith.mulf %177, %132 : vector<4x256xf32>
    %c86 = arith.constant 86 : index
    %179 = memref.load %arg1[%c86] : memref<98xf32, #tpu.memory_space<smem>>
    %180 = vector.broadcast %179 : f32 to vector<4x256xf32>
    %181 = arith.mulf %180, %135 : vector<4x256xf32>
    %182 = arith.addf %178, %181 : vector<4x256xf32>
    %183 = arith.addf %120, %182 : vector<4x256xf32>
    %c44 = arith.constant 44 : index
    %184 = memref.load %arg1[%c44] : memref<98xf32, #tpu.memory_space<smem>>
    %185 = vector.broadcast %184 : f32 to vector<4x256xf32>
    %186 = arith.mulf %185, %132 : vector<4x256xf32>
    %c93 = arith.constant 93 : index
    %187 = memref.load %arg1[%c93] : memref<98xf32, #tpu.memory_space<smem>>
    %188 = vector.broadcast %187 : f32 to vector<4x256xf32>
    %189 = arith.mulf %188, %135 : vector<4x256xf32>
    %190 = arith.addf %186, %189 : vector<4x256xf32>
    %191 = arith.addf %128, %190 : vector<4x256xf32>
    %c3 = arith.constant 3 : index
    %c0_19 = arith.constant 0 : index
    %192 = vector.load %arg4[%c3, %c0_19] : memref<14x256xf32, #tpu.memory_space<vmem>>, vector<1x256xf32>
    %193 = vector.broadcast %192 : vector<1x256xf32> to vector<4x256xf32>
    %194 = arith.mulf %193, %4 : vector<4x256xf32>
    %195 = vector.broadcast %192 : vector<1x256xf32> to vector<4x256xf32>
    %196 = arith.mulf %195, %9 : vector<4x256xf32>
    %c3_20 = arith.constant 3 : index
    %197 = memref.load %arg1[%c3_20] : memref<98xf32, #tpu.memory_space<smem>>
    %198 = vector.broadcast %197 : f32 to vector<4x256xf32>
    %199 = arith.mulf %198, %194 : vector<4x256xf32>
    %c52 = arith.constant 52 : index
    %200 = memref.load %arg1[%c52] : memref<98xf32, #tpu.memory_space<smem>>
    %201 = vector.broadcast %200 : f32 to vector<4x256xf32>
    %202 = arith.mulf %201, %196 : vector<4x256xf32>
    %203 = arith.addf %199, %202 : vector<4x256xf32>
    %204 = arith.addf %143, %203 : vector<4x256xf32>
    %c10 = arith.constant 10 : index
    %205 = memref.load %arg1[%c10] : memref<98xf32, #tpu.memory_space<smem>>
    %206 = vector.broadcast %205 : f32 to vector<4x256xf32>
    %207 = arith.mulf %206, %194 : vector<4x256xf32>
    %c59 = arith.constant 59 : index
    %208 = memref.load %arg1[%c59] : memref<98xf32, #tpu.memory_space<smem>>
    %209 = vector.broadcast %208 : f32 to vector<4x256xf32>
    %210 = arith.mulf %209, %196 : vector<4x256xf32>
    %211 = arith.addf %207, %210 : vector<4x256xf32>
    %212 = arith.addf %151, %211 : vector<4x256xf32>
    %c17 = arith.constant 17 : index
    %213 = memref.load %arg1[%c17] : memref<98xf32, #tpu.memory_space<smem>>
    %214 = vector.broadcast %213 : f32 to vector<4x256xf32>
    %215 = arith.mulf %214, %194 : vector<4x256xf32>
    %c66 = arith.constant 66 : index
    %216 = memref.load %arg1[%c66] : memref<98xf32, #tpu.memory_space<smem>>
    %217 = vector.broadcast %216 : f32 to vector<4x256xf32>
    %218 = arith.mulf %217, %196 : vector<4x256xf32>
    %219 = arith.addf %215, %218 : vector<4x256xf32>
    %220 = arith.addf %159, %219 : vector<4x256xf32>
    %c24 = arith.constant 24 : index
    %221 = memref.load %arg1[%c24] : memref<98xf32, #tpu.memory_space<smem>>
    %222 = vector.broadcast %221 : f32 to vector<4x256xf32>
    %223 = arith.mulf %222, %194 : vector<4x256xf32>
    %c73 = arith.constant 73 : index
    %224 = memref.load %arg1[%c73] : memref<98xf32, #tpu.memory_space<smem>>
    %225 = vector.broadcast %224 : f32 to vector<4x256xf32>
    %226 = arith.mulf %225, %196 : vector<4x256xf32>
    %227 = arith.addf %223, %226 : vector<4x256xf32>
    %228 = arith.addf %167, %227 : vector<4x256xf32>
    %c31 = arith.constant 31 : index
    %229 = memref.load %arg1[%c31] : memref<98xf32, #tpu.memory_space<smem>>
    %230 = vector.broadcast %229 : f32 to vector<4x256xf32>
    %231 = arith.mulf %230, %194 : vector<4x256xf32>
    %c80 = arith.constant 80 : index
    %232 = memref.load %arg1[%c80] : memref<98xf32, #tpu.memory_space<smem>>
    %233 = vector.broadcast %232 : f32 to vector<4x256xf32>
    %234 = arith.mulf %233, %196 : vector<4x256xf32>
    %235 = arith.addf %231, %234 : vector<4x256xf32>
    %236 = arith.addf %175, %235 : vector<4x256xf32>
    %c38 = arith.constant 38 : index
    %237 = memref.load %arg1[%c38] : memref<98xf32, #tpu.memory_space<smem>>
    %238 = vector.broadcast %237 : f32 to vector<4x256xf32>
    %239 = arith.mulf %238, %194 : vector<4x256xf32>
    %c87 = arith.constant 87 : index
    %240 = memref.load %arg1[%c87] : memref<98xf32, #tpu.memory_space<smem>>
    %241 = vector.broadcast %240 : f32 to vector<4x256xf32>
    %242 = arith.mulf %241, %196 : vector<4x256xf32>
    %243 = arith.addf %239, %242 : vector<4x256xf32>
    %244 = arith.addf %183, %243 : vector<4x256xf32>
    %c45 = arith.constant 45 : index
    %245 = memref.load %arg1[%c45] : memref<98xf32, #tpu.memory_space<smem>>
    %246 = vector.broadcast %245 : f32 to vector<4x256xf32>
    %247 = arith.mulf %246, %194 : vector<4x256xf32>
    %c94 = arith.constant 94 : index
    %248 = memref.load %arg1[%c94] : memref<98xf32, #tpu.memory_space<smem>>
    %249 = vector.broadcast %248 : f32 to vector<4x256xf32>
    %250 = arith.mulf %249, %196 : vector<4x256xf32>
    %251 = arith.addf %247, %250 : vector<4x256xf32>
    %252 = arith.addf %191, %251 : vector<4x256xf32>
    %c4 = arith.constant 4 : index
    %c0_21 = arith.constant 0 : index
    %253 = vector.load %arg4[%c4, %c0_21] : memref<14x256xf32, #tpu.memory_space<vmem>>, vector<1x256xf32>
    %c255_i32 = arith.constant 255 : i32
    %254 = tpu.dynamic_rotate %4 by %c255_i32 dim 1 : vector<4x256xf32>, i32 -> vector<4x256xf32>
    %255 = vector.broadcast %253 : vector<1x256xf32> to vector<4x256xf32>
    %256 = arith.mulf %255, %254 : vector<4x256xf32>
    %c255_i32_22 = arith.constant 255 : i32
    %257 = tpu.dynamic_rotate %9 by %c255_i32_22 dim 1 : vector<4x256xf32>, i32 -> vector<4x256xf32>
    %258 = vector.broadcast %253 : vector<1x256xf32> to vector<4x256xf32>
    %259 = arith.mulf %258, %257 : vector<4x256xf32>
    %c4_23 = arith.constant 4 : index
    %260 = memref.load %arg1[%c4_23] : memref<98xf32, #tpu.memory_space<smem>>
    %261 = vector.broadcast %260 : f32 to vector<4x256xf32>
    %262 = arith.mulf %261, %256 : vector<4x256xf32>
    %c53 = arith.constant 53 : index
    %263 = memref.load %arg1[%c53] : memref<98xf32, #tpu.memory_space<smem>>
    %264 = vector.broadcast %263 : f32 to vector<4x256xf32>
    %265 = arith.mulf %264, %259 : vector<4x256xf32>
    %266 = arith.addf %262, %265 : vector<4x256xf32>
    %267 = arith.addf %204, %266 : vector<4x256xf32>
    %c11 = arith.constant 11 : index
    %268 = memref.load %arg1[%c11] : memref<98xf32, #tpu.memory_space<smem>>
    %269 = vector.broadcast %268 : f32 to vector<4x256xf32>
    %270 = arith.mulf %269, %256 : vector<4x256xf32>
    %c60 = arith.constant 60 : index
    %271 = memref.load %arg1[%c60] : memref<98xf32, #tpu.memory_space<smem>>
    %272 = vector.broadcast %271 : f32 to vector<4x256xf32>
    %273 = arith.mulf %272, %259 : vector<4x256xf32>
    %274 = arith.addf %270, %273 : vector<4x256xf32>
    %275 = arith.addf %212, %274 : vector<4x256xf32>
    %c18 = arith.constant 18 : index
    %276 = memref.load %arg1[%c18] : memref<98xf32, #tpu.memory_space<smem>>
    %277 = vector.broadcast %276 : f32 to vector<4x256xf32>
    %278 = arith.mulf %277, %256 : vector<4x256xf32>
    %c67 = arith.constant 67 : index
    %279 = memref.load %arg1[%c67] : memref<98xf32, #tpu.memory_space<smem>>
    %280 = vector.broadcast %279 : f32 to vector<4x256xf32>
    %281 = arith.mulf %280, %259 : vector<4x256xf32>
    %282 = arith.addf %278, %281 : vector<4x256xf32>
    %283 = arith.addf %220, %282 : vector<4x256xf32>
    %c25 = arith.constant 25 : index
    %284 = memref.load %arg1[%c25] : memref<98xf32, #tpu.memory_space<smem>>
    %285 = vector.broadcast %284 : f32 to vector<4x256xf32>
    %286 = arith.mulf %285, %256 : vector<4x256xf32>
    %c74 = arith.constant 74 : index
    %287 = memref.load %arg1[%c74] : memref<98xf32, #tpu.memory_space<smem>>
    %288 = vector.broadcast %287 : f32 to vector<4x256xf32>
    %289 = arith.mulf %288, %259 : vector<4x256xf32>
    %290 = arith.addf %286, %289 : vector<4x256xf32>
    %291 = arith.addf %228, %290 : vector<4x256xf32>
    %c32 = arith.constant 32 : index
    %292 = memref.load %arg1[%c32] : memref<98xf32, #tpu.memory_space<smem>>
    %293 = vector.broadcast %292 : f32 to vector<4x256xf32>
    %294 = arith.mulf %293, %256 : vector<4x256xf32>
    %c81 = arith.constant 81 : index
    %295 = memref.load %arg1[%c81] : memref<98xf32, #tpu.memory_space<smem>>
    %296 = vector.broadcast %295 : f32 to vector<4x256xf32>
    %297 = arith.mulf %296, %259 : vector<4x256xf32>
    %298 = arith.addf %294, %297 : vector<4x256xf32>
    %299 = arith.addf %236, %298 : vector<4x256xf32>
    %c39 = arith.constant 39 : index
    %300 = memref.load %arg1[%c39] : memref<98xf32, #tpu.memory_space<smem>>
    %301 = vector.broadcast %300 : f32 to vector<4x256xf32>
    %302 = arith.mulf %301, %256 : vector<4x256xf32>
    %c88 = arith.constant 88 : index
    %303 = memref.load %arg1[%c88] : memref<98xf32, #tpu.memory_space<smem>>
    %304 = vector.broadcast %303 : f32 to vector<4x256xf32>
    %305 = arith.mulf %304, %259 : vector<4x256xf32>
    %306 = arith.addf %302, %305 : vector<4x256xf32>
    %307 = arith.addf %244, %306 : vector<4x256xf32>
    %c46 = arith.constant 46 : index
    %308 = memref.load %arg1[%c46] : memref<98xf32, #tpu.memory_space<smem>>
    %309 = vector.broadcast %308 : f32 to vector<4x256xf32>
    %310 = arith.mulf %309, %256 : vector<4x256xf32>
    %c95 = arith.constant 95 : index
    %311 = memref.load %arg1[%c95] : memref<98xf32, #tpu.memory_space<smem>>
    %312 = vector.broadcast %311 : f32 to vector<4x256xf32>
    %313 = arith.mulf %312, %259 : vector<4x256xf32>
    %314 = arith.addf %310, %313 : vector<4x256xf32>
    %315 = arith.addf %252, %314 : vector<4x256xf32>
    %c5 = arith.constant 5 : index
    %c0_24 = arith.constant 0 : index
    %316 = vector.load %arg4[%c5, %c0_24] : memref<14x256xf32, #tpu.memory_space<vmem>>, vector<1x256xf32>
    %c254_i32 = arith.constant 254 : i32
    %317 = tpu.dynamic_rotate %4 by %c254_i32 dim 1 : vector<4x256xf32>, i32 -> vector<4x256xf32>
    %318 = vector.broadcast %316 : vector<1x256xf32> to vector<4x256xf32>
    %319 = arith.mulf %318, %317 : vector<4x256xf32>
    %c254_i32_25 = arith.constant 254 : i32
    %320 = tpu.dynamic_rotate %9 by %c254_i32_25 dim 1 : vector<4x256xf32>, i32 -> vector<4x256xf32>
    %321 = vector.broadcast %316 : vector<1x256xf32> to vector<4x256xf32>
    %322 = arith.mulf %321, %320 : vector<4x256xf32>
    %c5_26 = arith.constant 5 : index
    %323 = memref.load %arg1[%c5_26] : memref<98xf32, #tpu.memory_space<smem>>
    %324 = vector.broadcast %323 : f32 to vector<4x256xf32>
    %325 = arith.mulf %324, %319 : vector<4x256xf32>
    %c54 = arith.constant 54 : index
    %326 = memref.load %arg1[%c54] : memref<98xf32, #tpu.memory_space<smem>>
    %327 = vector.broadcast %326 : f32 to vector<4x256xf32>
    %328 = arith.mulf %327, %322 : vector<4x256xf32>
    %329 = arith.addf %325, %328 : vector<4x256xf32>
    %330 = arith.addf %267, %329 : vector<4x256xf32>
    %c12 = arith.constant 12 : index
    %331 = memref.load %arg1[%c12] : memref<98xf32, #tpu.memory_space<smem>>
    %332 = vector.broadcast %331 : f32 to vector<4x256xf32>
    %333 = arith.mulf %332, %319 : vector<4x256xf32>
    %c61 = arith.constant 61 : index
    %334 = memref.load %arg1[%c61] : memref<98xf32, #tpu.memory_space<smem>>
    %335 = vector.broadcast %334 : f32 to vector<4x256xf32>
    %336 = arith.mulf %335, %322 : vector<4x256xf32>
    %337 = arith.addf %333, %336 : vector<4x256xf32>
    %338 = arith.addf %275, %337 : vector<4x256xf32>
    %c19 = arith.constant 19 : index
    %339 = memref.load %arg1[%c19] : memref<98xf32, #tpu.memory_space<smem>>
    %340 = vector.broadcast %339 : f32 to vector<4x256xf32>
    %341 = arith.mulf %340, %319 : vector<4x256xf32>
    %c68 = arith.constant 68 : index
    %342 = memref.load %arg1[%c68] : memref<98xf32, #tpu.memory_space<smem>>
    %343 = vector.broadcast %342 : f32 to vector<4x256xf32>
    %344 = arith.mulf %343, %322 : vector<4x256xf32>
    %345 = arith.addf %341, %344 : vector<4x256xf32>
    %346 = arith.addf %283, %345 : vector<4x256xf32>
    %c26 = arith.constant 26 : index
    %347 = memref.load %arg1[%c26] : memref<98xf32, #tpu.memory_space<smem>>
    %348 = vector.broadcast %347 : f32 to vector<4x256xf32>
    %349 = arith.mulf %348, %319 : vector<4x256xf32>
    %c75 = arith.constant 75 : index
    %350 = memref.load %arg1[%c75] : memref<98xf32, #tpu.memory_space<smem>>
    %351 = vector.broadcast %350 : f32 to vector<4x256xf32>
    %352 = arith.mulf %351, %322 : vector<4x256xf32>
    %353 = arith.addf %349, %352 : vector<4x256xf32>
    %354 = arith.addf %291, %353 : vector<4x256xf32>
    %c33 = arith.constant 33 : index
    %355 = memref.load %arg1[%c33] : memref<98xf32, #tpu.memory_space<smem>>
    %356 = vector.broadcast %355 : f32 to vector<4x256xf32>
    %357 = arith.mulf %356, %319 : vector<4x256xf32>
    %c82 = arith.constant 82 : index
    %358 = memref.load %arg1[%c82] : memref<98xf32, #tpu.memory_space<smem>>
    %359 = vector.broadcast %358 : f32 to vector<4x256xf32>
    %360 = arith.mulf %359, %322 : vector<4x256xf32>
    %361 = arith.addf %357, %360 : vector<4x256xf32>
    %362 = arith.addf %299, %361 : vector<4x256xf32>
    %c40 = arith.constant 40 : index
    %363 = memref.load %arg1[%c40] : memref<98xf32, #tpu.memory_space<smem>>
    %364 = vector.broadcast %363 : f32 to vector<4x256xf32>
    %365 = arith.mulf %364, %319 : vector<4x256xf32>
    %c89 = arith.constant 89 : index
    %366 = memref.load %arg1[%c89] : memref<98xf32, #tpu.memory_space<smem>>
    %367 = vector.broadcast %366 : f32 to vector<4x256xf32>
    %368 = arith.mulf %367, %322 : vector<4x256xf32>
    %369 = arith.addf %365, %368 : vector<4x256xf32>
    %370 = arith.addf %307, %369 : vector<4x256xf32>
    %c47 = arith.constant 47 : index
    %371 = memref.load %arg1[%c47] : memref<98xf32, #tpu.memory_space<smem>>
    %372 = vector.broadcast %371 : f32 to vector<4x256xf32>
    %373 = arith.mulf %372, %319 : vector<4x256xf32>
    %c96 = arith.constant 96 : index
    %374 = memref.load %arg1[%c96] : memref<98xf32, #tpu.memory_space<smem>>
    %375 = vector.broadcast %374 : f32 to vector<4x256xf32>
    %376 = arith.mulf %375, %322 : vector<4x256xf32>
    %377 = arith.addf %373, %376 : vector<4x256xf32>
    %378 = arith.addf %315, %377 : vector<4x256xf32>
    %c6 = arith.constant 6 : index
    %c0_27 = arith.constant 0 : index
    %379 = vector.load %arg4[%c6, %c0_27] : memref<14x256xf32, #tpu.memory_space<vmem>>, vector<1x256xf32>
    %c253_i32 = arith.constant 253 : i32
    %380 = tpu.dynamic_rotate %4 by %c253_i32 dim 1 : vector<4x256xf32>, i32 -> vector<4x256xf32>
    %381 = vector.broadcast %379 : vector<1x256xf32> to vector<4x256xf32>
    %382 = arith.mulf %381, %380 : vector<4x256xf32>
    %c253_i32_28 = arith.constant 253 : i32
    %383 = tpu.dynamic_rotate %9 by %c253_i32_28 dim 1 : vector<4x256xf32>, i32 -> vector<4x256xf32>
    %384 = vector.broadcast %379 : vector<1x256xf32> to vector<4x256xf32>
    %385 = arith.mulf %384, %383 : vector<4x256xf32>
    %c6_29 = arith.constant 6 : index
    %386 = memref.load %arg1[%c6_29] : memref<98xf32, #tpu.memory_space<smem>>
    %387 = vector.broadcast %386 : f32 to vector<4x256xf32>
    %388 = arith.mulf %387, %382 : vector<4x256xf32>
    %c55 = arith.constant 55 : index
    %389 = memref.load %arg1[%c55] : memref<98xf32, #tpu.memory_space<smem>>
    %390 = vector.broadcast %389 : f32 to vector<4x256xf32>
    %391 = arith.mulf %390, %385 : vector<4x256xf32>
    %392 = arith.addf %388, %391 : vector<4x256xf32>
    %393 = arith.addf %330, %392 : vector<4x256xf32>
    %c13 = arith.constant 13 : index
    %394 = memref.load %arg1[%c13] : memref<98xf32, #tpu.memory_space<smem>>
    %395 = vector.broadcast %394 : f32 to vector<4x256xf32>
    %396 = arith.mulf %395, %382 : vector<4x256xf32>
    %c62 = arith.constant 62 : index
    %397 = memref.load %arg1[%c62] : memref<98xf32, #tpu.memory_space<smem>>
    %398 = vector.broadcast %397 : f32 to vector<4x256xf32>
    %399 = arith.mulf %398, %385 : vector<4x256xf32>
    %400 = arith.addf %396, %399 : vector<4x256xf32>
    %401 = arith.addf %338, %400 : vector<4x256xf32>
    %c20 = arith.constant 20 : index
    %402 = memref.load %arg1[%c20] : memref<98xf32, #tpu.memory_space<smem>>
    %403 = vector.broadcast %402 : f32 to vector<4x256xf32>
    %404 = arith.mulf %403, %382 : vector<4x256xf32>
    %c69 = arith.constant 69 : index
    %405 = memref.load %arg1[%c69] : memref<98xf32, #tpu.memory_space<smem>>
    %406 = vector.broadcast %405 : f32 to vector<4x256xf32>
    %407 = arith.mulf %406, %385 : vector<4x256xf32>
    %408 = arith.addf %404, %407 : vector<4x256xf32>
    %409 = arith.addf %346, %408 : vector<4x256xf32>
    %c27 = arith.constant 27 : index
    %410 = memref.load %arg1[%c27] : memref<98xf32, #tpu.memory_space<smem>>
    %411 = vector.broadcast %410 : f32 to vector<4x256xf32>
    %412 = arith.mulf %411, %382 : vector<4x256xf32>
    %c76 = arith.constant 76 : index
    %413 = memref.load %arg1[%c76] : memref<98xf32, #tpu.memory_space<smem>>
    %414 = vector.broadcast %413 : f32 to vector<4x256xf32>
    %415 = arith.mulf %414, %385 : vector<4x256xf32>
    %416 = arith.addf %412, %415 : vector<4x256xf32>
    %417 = arith.addf %354, %416 : vector<4x256xf32>
    %c34 = arith.constant 34 : index
    %418 = memref.load %arg1[%c34] : memref<98xf32, #tpu.memory_space<smem>>
    %419 = vector.broadcast %418 : f32 to vector<4x256xf32>
    %420 = arith.mulf %419, %382 : vector<4x256xf32>
    %c83 = arith.constant 83 : index
    %421 = memref.load %arg1[%c83] : memref<98xf32, #tpu.memory_space<smem>>
    %422 = vector.broadcast %421 : f32 to vector<4x256xf32>
    %423 = arith.mulf %422, %385 : vector<4x256xf32>
    %424 = arith.addf %420, %423 : vector<4x256xf32>
    %425 = arith.addf %362, %424 : vector<4x256xf32>
    %c41 = arith.constant 41 : index
    %426 = memref.load %arg1[%c41] : memref<98xf32, #tpu.memory_space<smem>>
    %427 = vector.broadcast %426 : f32 to vector<4x256xf32>
    %428 = arith.mulf %427, %382 : vector<4x256xf32>
    %c90 = arith.constant 90 : index
    %429 = memref.load %arg1[%c90] : memref<98xf32, #tpu.memory_space<smem>>
    %430 = vector.broadcast %429 : f32 to vector<4x256xf32>
    %431 = arith.mulf %430, %385 : vector<4x256xf32>
    %432 = arith.addf %428, %431 : vector<4x256xf32>
    %433 = arith.addf %370, %432 : vector<4x256xf32>
    %c48 = arith.constant 48 : index
    %434 = memref.load %arg1[%c48] : memref<98xf32, #tpu.memory_space<smem>>
    %435 = vector.broadcast %434 : f32 to vector<4x256xf32>
    %436 = arith.mulf %435, %382 : vector<4x256xf32>
    %c97 = arith.constant 97 : index
    %437 = memref.load %arg1[%c97] : memref<98xf32, #tpu.memory_space<smem>>
    %438 = vector.broadcast %437 : f32 to vector<4x256xf32>
    %439 = arith.mulf %438, %385 : vector<4x256xf32>
    %440 = arith.addf %436, %439 : vector<4x256xf32>
    %441 = arith.addf %378, %440 : vector<4x256xf32>
    %c7_30 = arith.constant 7 : index
    %c0_31 = arith.constant 0 : index
    %442 = vector.load %arg4[%c7_30, %c0_31] : memref<14x256xf32, #tpu.memory_space<vmem>>, vector<1x256xf32>
    %c48_i32 = arith.constant 48 : i32
    %443 = tpu.dynamic_rotate %393 by %c48_i32 dim 1 : vector<4x256xf32>, i32 -> vector<4x256xf32>
    %444 = vector.broadcast %442 : vector<1x256xf32> to vector<4x256xf32>
    %445 = arith.mulf %444, %443 : vector<4x256xf32>
    %c8_32 = arith.constant 8 : index
    %c0_33 = arith.constant 0 : index
    %446 = vector.load %arg4[%c8_32, %c0_33] : memref<14x256xf32, #tpu.memory_space<vmem>>, vector<1x256xf32>
    %c32_i32 = arith.constant 32 : i32
    %447 = tpu.dynamic_rotate %401 by %c32_i32 dim 1 : vector<4x256xf32>, i32 -> vector<4x256xf32>
    %448 = vector.broadcast %446 : vector<1x256xf32> to vector<4x256xf32>
    %449 = arith.mulf %448, %447 : vector<4x256xf32>
    %450 = arith.addf %445, %449 : vector<4x256xf32>
    %c9_34 = arith.constant 9 : index
    %c0_35 = arith.constant 0 : index
    %451 = vector.load %arg4[%c9_34, %c0_35] : memref<14x256xf32, #tpu.memory_space<vmem>>, vector<1x256xf32>
    %c16_i32 = arith.constant 16 : i32
    %452 = tpu.dynamic_rotate %409 by %c16_i32 dim 1 : vector<4x256xf32>, i32 -> vector<4x256xf32>
    %453 = vector.broadcast %451 : vector<1x256xf32> to vector<4x256xf32>
    %454 = arith.mulf %453, %452 : vector<4x256xf32>
    %455 = arith.addf %450, %454 : vector<4x256xf32>
    %c10_36 = arith.constant 10 : index
    %c0_37 = arith.constant 0 : index
    %456 = vector.load %arg4[%c10_36, %c0_37] : memref<14x256xf32, #tpu.memory_space<vmem>>, vector<1x256xf32>
    %457 = vector.broadcast %456 : vector<1x256xf32> to vector<4x256xf32>
    %458 = arith.mulf %457, %417 : vector<4x256xf32>
    %459 = arith.addf %455, %458 : vector<4x256xf32>
    %c11_38 = arith.constant 11 : index
    %c0_39 = arith.constant 0 : index
    %460 = vector.load %arg4[%c11_38, %c0_39] : memref<14x256xf32, #tpu.memory_space<vmem>>, vector<1x256xf32>
    %c240_i32 = arith.constant 240 : i32
    %461 = tpu.dynamic_rotate %425 by %c240_i32 dim 1 : vector<4x256xf32>, i32 -> vector<4x256xf32>
    %462 = vector.broadcast %460 : vector<1x256xf32> to vector<4x256xf32>
    %463 = arith.mulf %462, %461 : vector<4x256xf32>
    %464 = arith.addf %459, %463 : vector<4x256xf32>
    %c12_40 = arith.constant 12 : index
    %c0_41 = arith.constant 0 : index
    %465 = vector.load %arg4[%c12_40, %c0_41] : memref<14x256xf32, #tpu.memory_space<vmem>>, vector<1x256xf32>
    %c224_i32 = arith.constant 224 : i32
    %466 = tpu.dynamic_rotate %433 by %c224_i32 dim 1 : vector<4x256xf32>, i32 -> vector<4x256xf32>
    %467 = vector.broadcast %465 : vector<1x256xf32> to vector<4x256xf32>
    %468 = arith.mulf %467, %466 : vector<4x256xf32>
    %469 = arith.addf %464, %468 : vector<4x256xf32>
    %c13_42 = arith.constant 13 : index
    %c0_43 = arith.constant 0 : index
    %470 = vector.load %arg4[%c13_42, %c0_43] : memref<14x256xf32, #tpu.memory_space<vmem>>, vector<1x256xf32>
    %c208_i32 = arith.constant 208 : i32
    %471 = tpu.dynamic_rotate %441 by %c208_i32 dim 1 : vector<4x256xf32>, i32 -> vector<4x256xf32>
    %472 = vector.broadcast %470 : vector<1x256xf32> to vector<4x256xf32>
    %473 = arith.mulf %472, %471 : vector<4x256xf32>
    %474 = arith.addf %469, %473 : vector<4x256xf32>
    %cst_44 = arith.constant dense<0.000000e+00> : vector<4xf32>
    %475 = vector.multi_reduction <add>, %474, %cst_44 [1] : vector<4x256xf32> to vector<4xf32>
    %476 = vector.shape_cast %475 : vector<4xf32> to vector<4x1xf32>
    %cst_45 = arith.constant 3.906250e-03 : f32
    %477 = vector.broadcast %cst_45 : f32 to vector<4x1xf32>
    %478 = arith.mulf %476, %477 : vector<4x1xf32>
    %479 = vector.broadcast %478 : vector<4x1xf32> to vector<4x256xf32>
    %480 = arith.subf %474, %479 : vector<4x256xf32>
    %481 = arith.mulf %480, %480 : vector<4x256xf32>
    %cst_46 = arith.constant dense<0.000000e+00> : vector<4xf32>
    %482 = vector.multi_reduction <add>, %481, %cst_46 [1] : vector<4x256xf32> to vector<4xf32>
    %483 = vector.shape_cast %482 : vector<4xf32> to vector<4x1xf32>
    %cst_47 = arith.constant 3.906250e-03 : f32
    %484 = vector.broadcast %cst_47 : f32 to vector<4x1xf32>
    %485 = arith.mulf %483, %484 : vector<4x1xf32>
    %cst_48 = arith.constant 9.99999974E-6 : f32
    %486 = vector.broadcast %cst_48 : f32 to vector<4x1xf32>
    %487 = arith.addf %485, %486 : vector<4x1xf32>
    %488 = math.rsqrt %487 : vector<4x1xf32>
    %489 = vector.broadcast %488 : vector<4x1xf32> to vector<4x256xf32>
    %490 = arith.mulf %480, %489 : vector<4x256xf32>
    %491 = arith.negf %490 : vector<4x256xf32>
    %492 = math.exp %491 : vector<4x256xf32>
    %cst_49 = arith.constant 1.000000e+00 : f32
    %493 = vector.broadcast %cst_49 : f32 to vector<4x256xf32>
    %494 = arith.addf %493, %492 : vector<4x256xf32>
    %495 = arith.divf %493, %494 : vector<4x256xf32>
    %496 = vector.extract_strided_slice %495 {offsets = [0, 0], sizes = [2, 256], strides = [1, 1]} : vector<4x256xf32> to vector<2x256xf32>
    %497 = vector.shape_cast %496 : vector<2x256xf32> to vector<2x1x256xf32>
    %498 = vector.extract_strided_slice %495 {offsets = [2, 0], sizes = [2, 256], strides = [1, 1]} : vector<4x256xf32> to vector<2x256xf32>
    %499 = vector.shape_cast %498 : vector<2x256xf32> to vector<2x1x256xf32>
    %500 = vector.broadcast %497 : vector<2x1x256xf32> to vector<2x32x256xf32>
    %501 = arith.mulf %0, %500 : vector<2x32x256xf32>
    %cst_50 = arith.constant dense<0.000000e+00> : vector<2x32xf32>
    %502 = vector.multi_reduction <add>, %501, %cst_50 [2] : vector<2x32x256xf32> to vector<2x32xf32>
    %503 = vector.broadcast %499 : vector<2x1x256xf32> to vector<2x32x256xf32>
    %504 = arith.mulf %1, %503 : vector<2x32x256xf32>
    %cst_51 = arith.constant dense<0.000000e+00> : vector<2x32xf32>
    %505 = vector.multi_reduction <add>, %504, %cst_51 [2] : vector<2x32x256xf32> to vector<2x32xf32>
    %506 = tpu.concatenate %502, %505 in 0 : vector<2x32xf32>, vector<2x32xf32> -> vector<4x32xf32>
    %cst_52 = arith.constant 3.906250e-03 : f32
    %507 = vector.broadcast %cst_52 : f32 to vector<4x32xf32>
    %508 = arith.mulf %506, %507 : vector<4x32xf32>
    %c0_53 = arith.constant 0 : index
    %c0_54 = arith.constant 0 : index
    %509 = vector.load %arg5[%c0_53, %c0_54] : memref<32x4xf32, #tpu.memory_space<vmem>>, vector<32x4xf32>
    %cst_55 = arith.constant dense<0.000000e+00> : vector<4x4xf32>
    %510 = tpu.matmul %508, %509, %cst_55 {dimension_numbers = #tpu.dot_dimension_numbers<[1], [0], [0], [1], [0, 0, 1, 1], [], []>} : vector<4x32xf32>, vector<32x4xf32>, vector<4x4xf32> -> vector<4x4xf32>
    %c0_56 = arith.constant 0 : index
    %c0_57 = arith.constant 0 : index
    %511 = vector.load %arg6[%c0_56, %c0_57] : memref<1x4xf32, #tpu.memory_space<vmem>>, vector<1x4xf32>
    %512 = vector.broadcast %511 : vector<1x4xf32> to vector<4x4xf32>
    %513 = arith.addf %510, %512 : vector<4x4xf32>
    %cst_58 = arith.constant 0.000000e+00 : f32
    %514 = vector.broadcast %cst_58 : f32 to vector<4x4xf32>
    %515 = arith.maximumf %513, %514 : vector<4x4xf32>
    %c0_59 = arith.constant 0 : index
    %c0_60 = arith.constant 0 : index
    %516 = vector.load %arg7[%c0_59, %c0_60] : memref<4x32xf32, #tpu.memory_space<vmem>>, vector<4x32xf32>
    %cst_61 = arith.constant dense<0.000000e+00> : vector<4x32xf32>
    %517 = tpu.matmul %515, %516, %cst_61 {dimension_numbers = #tpu.dot_dimension_numbers<[1], [0], [0], [1], [0, 0, 1, 1], [], []>} : vector<4x4xf32>, vector<4x32xf32>, vector<4x32xf32> -> vector<4x32xf32>
    %c0_62 = arith.constant 0 : index
    %c0_63 = arith.constant 0 : index
    %518 = vector.load %arg8[%c0_62, %c0_63] : memref<1x32xf32, #tpu.memory_space<vmem>>, vector<1x32xf32>
    %519 = vector.broadcast %518 : vector<1x32xf32> to vector<4x32xf32>
    %520 = arith.addf %517, %519 : vector<4x32xf32>
    %521 = vector.extract_strided_slice %520 {offsets = [0, 0], sizes = [2, 32], strides = [1, 1]} : vector<4x32xf32> to vector<2x32xf32>
    %522 = vector.extract_strided_slice %520 {offsets = [2, 0], sizes = [2, 32], strides = [1, 1]} : vector<4x32xf32> to vector<2x32xf32>
    %523 = arith.subf %521, %522 : vector<2x32xf32>
    %524 = arith.negf %523 : vector<2x32xf32>
    %525 = math.exp %524 : vector<2x32xf32>
    %cst_64 = arith.constant 1.000000e+00 : f32
    %526 = vector.broadcast %cst_64 : f32 to vector<2x32xf32>
    %527 = arith.addf %526, %525 : vector<2x32xf32>
    %528 = arith.divf %526, %527 : vector<2x32xf32>
    %529 = vector.shape_cast %528 : vector<2x32xf32> to vector<2x32x1xf32>
    %530 = vector.broadcast %529 : vector<2x32x1xf32> to vector<2x32x256xf32>
    %531 = vector.broadcast %497 : vector<2x1x256xf32> to vector<2x32x256xf32>
    %532 = arith.mulf %530, %531 : vector<2x32x256xf32>
    %533 = arith.mulf %0, %532 : vector<2x32x256xf32>
    %cst_65 = arith.constant 1.000000e+00 : f32
    %534 = vector.broadcast %cst_65 : f32 to vector<2x32x1xf32>
    %535 = arith.subf %534, %529 : vector<2x32x1xf32>
    %536 = vector.broadcast %535 : vector<2x32x1xf32> to vector<2x32x256xf32>
    %537 = vector.broadcast %499 : vector<2x1x256xf32> to vector<2x32x256xf32>
    %538 = arith.mulf %536, %537 : vector<2x32x256xf32>
    %539 = arith.mulf %1, %538 : vector<2x32x256xf32>
    %540 = arith.addf %533, %539 : vector<2x32x256xf32>
    %c0_66 = arith.constant 0 : index
    %c0_67 = arith.constant 0 : index
    %c0_68 = arith.constant 0 : index
    %541 = vector.load %arg9[%c0_66, %c0_67, %c0_68] : memref<2x32x256xf32, #tpu.memory_space<vmem>>, vector<2x32x256xf32>
    tpu.vector_store %arg9[%c0_66, %c0_67, %c0_68], %540 {strides = array<i32>} : memref<2x32x256xf32, #tpu.memory_space<vmem>>, vector<2x32x256xf32>,
    return
  }
  func.func @transform_0(%arg0: i32, %arg1: memref<98xf32, #tpu.memory_space<smem>>) -> (i32, i32, i32) {
    %c0_i32 = arith.constant 0 : i32
    %c0_i32_0 = arith.constant 0 : i32
    %c0_i32_1 = arith.constant 0 : i32
    return %arg0, %c0_i32, %c0_i32_0 : i32, i32, i32
  }
  func.func @transform_1(%arg0: i32, %arg1: memref<98xf32, #tpu.memory_space<smem>>) -> (i32, i32, i32) {
    %c0_i32 = arith.constant 0 : i32
    %c0_i32_0 = arith.constant 0 : i32
    %c0_i32_1 = arith.constant 0 : i32
    return %arg0, %c0_i32, %c0_i32_0 : i32, i32, i32
  }
  func.func @transform_2(%arg0: i32, %arg1: memref<98xf32, #tpu.memory_space<smem>>) -> (i32, i32) {
    %c0_i32 = arith.constant 0 : i32
    %c0_i32_0 = arith.constant 0 : i32
    %c0_i32_1 = arith.constant 0 : i32
    return %c0_i32, %c0_i32_0 : i32, i32
  }
  func.func @transform_3(%arg0: i32, %arg1: memref<98xf32, #tpu.memory_space<smem>>) -> (i32, i32) {
    %c0_i32 = arith.constant 0 : i32
    %c0_i32_0 = arith.constant 0 : i32
    %c0_i32_1 = arith.constant 0 : i32
    return %c0_i32, %c0_i32_0 : i32, i32
  }
  func.func @transform_4(%arg0: i32, %arg1: memref<98xf32, #tpu.memory_space<smem>>) -> (i32, i32) {
    %c0_i32 = arith.constant 0 : i32
    %c0_i32_0 = arith.constant 0 : i32
    %c0_i32_1 = arith.constant 0 : i32
    return %c0_i32, %c0_i32_0 : i32, i32
  }
  func.func @transform_5(%arg0: i32, %arg1: memref<98xf32, #tpu.memory_space<smem>>) -> (i32, i32) {
    %c0_i32 = arith.constant 0 : i32
    %c0_i32_0 = arith.constant 0 : i32
    %c0_i32_1 = arith.constant 0 : i32
    return %c0_i32, %c0_i32_0 : i32, i32
  }
  func.func @transform_6(%arg0: i32, %arg1: memref<98xf32, #tpu.memory_space<smem>>) -> (i32, i32) {
    %c0_i32 = arith.constant 0 : i32
    %c0_i32_0 = arith.constant 0 : i32
    %c0_i32_1 = arith.constant 0 : i32
    return %c0_i32, %c0_i32_0 : i32, i32
  }
  func.func @transform_7(%arg0: i32, %arg1: memref<98xf32, #tpu.memory_space<smem>>) -> (i32, i32, i32) {
    %c0_i32 = arith.constant 0 : i32
    %c0_i32_0 = arith.constant 0 : i32
    %c0_i32_1 = arith.constant 0 : i32
    return %arg0, %c0_i32, %c0_i32_0 : i32, i32, i32
  }
}

</mosaic_0001>

<llo_original>
// kernel: tpu_custom_call.1
$region0: #{tpu_custom_call.1}
  #allocation0 [shape = 'u32[]', space=smem, size = 0x4, offset = 0x4, fixed_abs, tag = 'smem constant byte address 0x4 - core index']
  #allocation1 [shape = 'u32[144,128]{1,0:T(1,128)}', space=vmem, size = 0x12000, scoped, tag = 'internal scratch']
  #allocation2 [shape = 's32[1]{0}', space=sflag, size = 0x4, scoped, tag = 'scoped memory for tpu_custom_call.1']
  #allocation3 [shape = 'u8[512]{0}', space=smem, size = 0x200, scoped, tag = 'prefetched SMEM operand 0']
  %s0 = inlined_call_operand.vmem [shape: f32[98], index: 0, kind: input, shape index: {}]
  %s1 = inlined_call_operand.hbm [shape: f32[2,32,256], index: 1, kind: input, shape index: {}]
  %s2 = inlined_call_operand.hbm [shape: f32[2,32,256], index: 2, kind: input, shape index: {}]
  %s3 = inlined_call_operand.vmem [shape: f32[14,256], index: 3, kind: input, shape index: {}]
  %s4 = inlined_call_operand.vmem [shape: f32[32,4], index: 4, kind: input, shape index: {}]
  %s5 = inlined_call_operand.vmem [shape: f32[1,4], index: 5, kind: input, shape index: {}]
  %s6 = inlined_call_operand.vmem [shape: f32[4,32], index: 6, kind: input, shape index: {}]
  %s7 = inlined_call_operand.vmem [shape: f32[1,32], index: 7, kind: input, shape index: {}]
  %s8 = inlined_call_operand.hbm [shape: f32[2,32,256], index: 8, kind: output, shape index: {}]
  %s9 = sld [smem:[#allocation0]]
  $region46: #{tpu_custom_call.1} parent=0
    _
  %s11 = ssub.s32 1, %s9
  %s12 = scalar_select 0, %s11, %s9
  %s13 = sshll.u32 %s0, 4
  %s14 = int_to_ptr.vmem [resolvable:$true] %s13
  %16 = dma.vmem_to_smem %s14, 16, [#allocation3], [#allocation2]
  %17 = dma.done [#allocation2], 16
  %18 = sfence
  $region1: #{tpu_custom_call.1} parent=0
    #allocation4 [shape = 'u8[65536]{0}', space=vmem, size = 0x10000, scoped, tag = 'input window, operand 1, single buffered']
    #allocation5 [shape = 's32[1]{0}', space=sflag, size = 0x4, scoped, tag = 'scoped memory for tpu_custom_call.1']
    #allocation6 [shape = 's32[1]{0}', space=sflag, size = 0x4, scoped, tag = 'scoped memory for tpu_custom_call.1']
    #allocation7 [shape = 'u8[65536]{0}', space=vmem, size = 0x10000, scoped, tag = 'input window, operand 2, single buffered']
    #allocation8 [shape = 's32[1]{0}', space=sflag, size = 0x4, scoped, tag = 'scoped memory for tpu_custom_call.1']
    #allocation9 [shape = 'u8[65536]{0}', space=vmem, size = 0x10000, scoped, tag = 'output window, operand 0, single buffered']
    %19 = vsyncpa [#allocation5], 0
    %20 = vsyncpa [#allocation8], 0
    %21 = vsyncpa [#allocation6], 0
    // Predicated region
    $region2: #{tpu_custom_call.1} parent=1 // pred_check
      _
    $region3: #{tpu_custom_call.1} parent=1 // pred_check_branch
      %23 = sbr.rel (0) target = $region5
    $region4: #{tpu_custom_call.1} parent=1 // pred_region
      %s25 = ssub.s32 2048, 2048
      %26 = vsyncadd [#allocation5], %s25
      %s27 = sshll.u32 [#allocation4], 4
      %s28 = int_to_ptr.vmem [resolvable:$true] %s27
      %33 = dma.hbm_to_vmem [thread:$0]  %s1, 2048, %s28, [#allocation5], 256, 256, 16
    $region5: #{tpu_custom_call.1} parent=1 // pred_fallthru
      _
    // Predicated region
    $region6: #{tpu_custom_call.1} parent=1 // pred_check
      _
    $region7: #{tpu_custom_call.1} parent=1 // pred_check_branch
      %35 = sbr.rel (0) target = $region9
    $region8: #{tpu_custom_call.1} parent=1 // pred_region
      %s37 = ssub.s32 2048, 2048
      %38 = vsyncadd [#allocation8], %s37
      %s39 = sshll.u32 [#allocation7], 4
      %s40 = int_to_ptr.vmem [resolvable:$true] %s39
      %45 = dma.hbm_to_vmem [thread:$0]  %s2, 2048, %s40, [#allocation8], 256, 256, 16
    $region9: #{tpu_custom_call.1} parent=1 // pred_fallthru
      _
    // Predicated region
    $region10: #{tpu_custom_call.1} parent=1 // pred_check
      _
    $region11: #{tpu_custom_call.1} parent=1 // pred_check_branch
      %47 = sbr.rel (0) target = $region13
    $region12: #{tpu_custom_call.1} parent=1 // pred_region
      _
    $region13: #{tpu_custom_call.1} parent=1 // pred_fallthru
      _
    // Predicated region
    $region14: #{tpu_custom_call.1} parent=1 // pred_check
      _
    $region15: #{tpu_custom_call.1} parent=1 // pred_check_branch
      %49 = sbr.rel (0) target = $region17
    $region16: #{tpu_custom_call.1} parent=1 // pred_region
      _
    $region17: #{tpu_custom_call.1} parent=1 // pred_fallthru
      _
    // Predicated region
    $region18: #{tpu_custom_call.1} parent=1 // pred_check
      _
    $region19: #{tpu_custom_call.1} parent=1 // pred_check_branch
      %51 = sbr.rel (0) target = $region21
    $region20: #{tpu_custom_call.1} parent=1 // pred_region
      _
    $region21: #{tpu_custom_call.1} parent=1 // pred_fallthru
      _
    // Predicated region
    $region22: #{tpu_custom_call.1} parent=1 // pred_check
      _
    $region23: #{tpu_custom_call.1} parent=1 // pred_check_branch
      %53 = sbr.rel (0) target = $region25
    $region24: #{tpu_custom_call.1} parent=1 // pred_region
      _
    $region25: #{tpu_custom_call.1} parent=1 // pred_fallthru
      _
    // Predicated region
    $region26: #{tpu_custom_call.1} parent=1 // pred_check
      _
    $region27: #{tpu_custom_call.1} parent=1 // pred_check_branch
      %55 = sbr.rel (0) target = $region29
    $region28: #{tpu_custom_call.1} parent=1 // pred_region
      _
    $region29: #{tpu_custom_call.1} parent=1 // pred_fallthru
      _
    // Predicated region
    $region30: #{tpu_custom_call.1} parent=1 // pred_check
      _
    $region31: #{tpu_custom_call.1} parent=1 // pred_check_branch
      %57 = sbr.rel (0) target = $region33
    $region32: #{tpu_custom_call.1} parent=1 // pred_region
      %58 = dma.done [#allocation5], 2048
    $region33: #{tpu_custom_call.1} parent=1 // pred_fallthru
      _
    // Predicated region
    $region34: #{tpu_custom_call.1} parent=1 // pred_check
      _
    $region35: #{tpu_custom_call.1} parent=1 // pred_check_branch
      %60 = sbr.rel (0) target = $region37
    $region36: #{tpu_custom_call.1} parent=1 // pred_region
      %61 = dma.done [#allocation8], 2048
    $region37: #{tpu_custom_call.1} parent=1 // pred_fallthru
      _
    %v62 = vld [vmem:[#allocation4] sm:$0xff]
    %v63 = vld [vmem:[#allocation4 + $0x8] sm:$0xff]
    %v64 = vld [vmem:[#allocation4 + $0x10] sm:$0xff]
    %v65 = vld [vmem:[#allocation4 + $0x18] sm:$0xff]
    %v66 = vld [vmem:[#allocation4 + $0x20] sm:$0xff]
    %v67 = vld [vmem:[#allocation4 + $0x28] sm:$0xff]
    %v68 = vld [vmem:[#allocation4 + $0x30] sm:$0xff]
    %v69 = vld [vmem:[#allocation4 + $0x38] sm:$0xff]
    %v70 = vld [vmem:[#allocation4 + $0x40] sm:$0xff]
    %v71 = vld [vmem:[#allocation4 + $0x48] sm:$0xff]
    %v72 = vld [vmem:[#allocation4 + $0x50] sm:$0xff]
    %v73 = vld [vmem:[#allocation4 + $0x58] sm:$0xff]
    %v74 = vld [vmem:[#allocation4 + $0x60] sm:$0xff]
    %v75 = vld [vmem:[#allocation4 + $0x68] sm:$0xff]
    %v76 = vld [vmem:[#allocation4 + $0x70] sm:$0xff]
    %v77 = vld [vmem:[#allocation4 + $0x78] sm:$0xff]
    %v78 = vld [vmem:[#allocation7] sm:$0xff]
    %v79 = vld [vmem:[#allocation7 + $0x8] sm:$0xff]
    %v80 = vld [vmem:[#allocation7 + $0x10] sm:$0xff]
    %v81 = vld [vmem:[#allocation7 + $0x18] sm:$0xff]
    %v82 = vld [vmem:[#allocation7 + $0x20] sm:$0xff]
    %v83 = vld [vmem:[#allocation7 + $0x28] sm:$0xff]
    %v84 = vld [vmem:[#allocation7 + $0x30] sm:$0xff]
    %v85 = vld [vmem:[#allocation7 + $0x38] sm:$0xff]
    %v86 = vld [vmem:[#allocation7 + $0x40] sm:$0xff]
    %v87 = vld [vmem:[#allocation7 + $0x48] sm:$0xff]
    %v88 = vld [vmem:[#allocation7 + $0x50] sm:$0xff]
    %v89 = vld [vmem:[#allocation7 + $0x58] sm:$0xff]
    %v90 = vld [vmem:[#allocation7 + $0x60] sm:$0xff]
    %v91 = vld [vmem:[#allocation7 + $0x68] sm:$0xff]
    %v92 = vld [vmem:[#allocation7 + $0x70] sm:$0xff]
    %v93 = vld [vmem:[#allocation7 + $0x78] sm:$0xff]
    %v94 = vmax.f32 %v62, %v64
    %v95 = vmax.f32 %v94, %v66
    %v96 = vmax.f32 %v95, %v68
    %v97 = vrot.slane %v96, 4
    %v98 = vmax.f32 %v96, %v97
    %v99 = vrot.slane %v98, 2
    %v100 = vmax.f32 %v98, %v99
    %v101 = vrot.slane %v100, 1
    %v102 = vmax.f32 %v100, %v101
    %v103 = vmax.f32 %v63, %v65
    %v104 = vmax.f32 %v103, %v67
    %v105 = vmax.f32 %v104, %v69
    %v106 = vrot.slane %v105, 4
    %v107 = vmax.f32 %v105, %v106
    %v108 = vrot.slane %v107, 2
    %v109 = vmax.f32 %v107, %v108
    %v110 = vrot.slane %v109, 1
    %v111 = vmax.f32 %v109, %v110
    %v112 = vmax.f32 %v70, %v72
    %v113 = vmax.f32 %v112, %v74
    %v114 = vmax.f32 %v113, %v76
    %v115 = vrot.slane %v114, 4
    %v116 = vmax.f32 %v114, %v115
    %v117 = vrot.slane %v116, 2
    %v118 = vmax.f32 %v116, %v117
    %v119 = vrot.slane %v118, 1
    %v120 = vmax.f32 %v118, %v119
    %v121 = vmax.f32 %v71, %v73
    %v122 = vmax.f32 %v121, %v75
    %v123 = vmax.f32 %v122, %v77
    %v124 = vrot.slane %v123, 4
    %v125 = vmax.f32 %v123, %v124
    %v126 = vrot.slane %v125, 2
    %v127 = vmax.f32 %v125, %v126
    %v128 = vrot.slane %v127, 1
    %v129 = vmax.f32 %v127, %v128
    %v130 = vmax.f32 %v78, %v80
    %v131 = vmax.f32 %v130, %v82
    %v132 = vmax.f32 %v131, %v84
    %v133 = vrot.slane %v132, 4
    %v134 = vmax.f32 %v132, %v133
    %v135 = vrot.slane %v134, 2
    %v136 = vmax.f32 %v134, %v135
    %v137 = vrot.slane %v136, 1
    %v138 = vmax.f32 %v136, %v137
    %v139 = vmax.f32 %v79, %v81
    %v140 = vmax.f32 %v139, %v83
    %v141 = vmax.f32 %v140, %v85
    %v142 = vrot.slane %v141, 4
    %v143 = vmax.f32 %v141, %v142
    %v144 = vrot.slane %v143, 2
    %v145 = vmax.f32 %v143, %v144
    %v146 = vrot.slane %v145, 1
    %v147 = vmax.f32 %v145, %v146
    %v148 = vmax.f32 %v86, %v88
    %v149 = vmax.f32 %v148, %v90
    %v150 = vmax.f32 %v149, %v92
    %v151 = vrot.slane %v150, 4
    %v152 = vmax.f32 %v150, %v151
    %v153 = vrot.slane %v152, 2
    %v154 = vmax.f32 %v152, %v153
    %v155 = vrot.slane %v154, 1
    %v156 = vmax.f32 %v154, %v155
    %v157 = vmax.f32 %v87, %v89
    %v158 = vmax.f32 %v157, %v91
    %v159 = vmax.f32 %v158, %v93
    %v160 = vrot.slane %v159, 4
    %v161 = vmax.f32 %v159, %v160
    %v162 = vrot.slane %v161, 2
    %v163 = vmax.f32 %v161, %v162
    %v164 = vrot.slane %v163, 1
    %v165 = vmax.f32 %v163, %v164
    %vm170 = vcmask 1041409
    %v171 = vsel %vm170, %v120, %v102
    %v172 = vsel %vm170, %v129, %v111
    %vm179 = vcmask 1043459
    %v180 = vsel %vm179, %v156, %v138
    %v181 = vsel %vm179, %v165, %v147
    %vm184 = vcmask 1041408
    %v185 = vsel %vm184, %v171, %v180
    %v186 = vsel %vm184, %v172, %v181
    %v187 = vadd.f32 %v62, %v64
    %v188 = vadd.f32 %v187, %v66
    %v189 = vadd.f32 %v188, %v68
    %v190 = vrot.slane %v189, 4
    %v191 = vadd.f32 %v189, %v190
    %v192 = vrot.slane %v191, 2
    %v193 = vadd.f32 %v191, %v192
    %v194 = vrot.slane %v193, 1
    %v195 = vadd.f32 %v193, %v194
    %v196 = vadd.f32 %v63, %v65
    %v197 = vadd.f32 %v196, %v67
    %v198 = vadd.f32 %v197, %v69
    %v199 = vrot.slane %v198, 4
    %v200 = vadd.f32 %v198, %v199
    %v201 = vrot.slane %v200, 2
    %v202 = vadd.f32 %v200, %v201
    %v203 = vrot.slane %v202, 1
    %v204 = vadd.f32 %v202, %v203
    %v205 = vadd.f32 %v70, %v72
    %v206 = vadd.f32 %v205, %v74
    %v207 = vadd.f32 %v206, %v76
    %v208 = vrot.slane %v207, 4
    %v209 = vadd.f32 %v207, %v208
    %v210 = vrot.slane %v209, 2
    %v211 = vadd.f32 %v209, %v210
    %v212 = vrot.slane %v211, 1
    %v213 = vadd.f32 %v211, %v212
    %v214 = vadd.f32 %v71, %v73
    %v215 = vadd.f32 %v214, %v75
    %v216 = vadd.f32 %v215, %v77
    %v217 = vrot.slane %v216, 4
    %v218 = vadd.f32 %v216, %v217
    %v219 = vrot.slane %v218, 2
    %v220 = vadd.f32 %v218, %v219
    %v221 = vrot.slane %v220, 1
    %v222 = vadd.f32 %v220, %v221
    %v223 = vadd.f32 %v78, %v80
    %v224 = vadd.f32 %v223, %v82
    %v225 = vadd.f32 %v224, %v84
    %v226 = vrot.slane %v225, 4
    %v227 = vadd.f32 %v225, %v226
    %v228 = vrot.slane %v227, 2
    %v229 = vadd.f32 %v227, %v228
    %v230 = vrot.slane %v229, 1
    %v231 = vadd.f32 %v229, %v230
    %v232 = vadd.f32 %v79, %v81
    %v233 = vadd.f32 %v232, %v83
    %v234 = vadd.f32 %v233, %v85
    %v235 = vrot.slane %v234, 4
    %v236 = vadd.f32 %v234, %v235
    %v237 = vrot.slane %v236, 2
    %v238 = vadd.f32 %v236, %v237
    %v239 = vrot.slane %v238, 1
    %v240 = vadd.f32 %v238, %v239
    %v241 = vadd.f32 %v86, %v88
    %v242 = vadd.f32 %v241, %v90
    %v243 = vadd.f32 %v242, %v92
    %v244 = vrot.slane %v243, 4
    %v245 = vadd.f32 %v243, %v244
    %v246 = vrot.slane %v245, 2
    %v247 = vadd.f32 %v245, %v246
    %v248 = vrot.slane %v247, 1
    %v249 = vadd.f32 %v247, %v248
    %v250 = vadd.f32 %v87, %v89
    %v251 = vadd.f32 %v250, %v91
    %v252 = vadd.f32 %v251, %v93
    %v253 = vrot.slane %v252, 4
    %v254 = vadd.f32 %v252, %v253
    %v255 = vrot.slane %v254, 2
    %v256 = vadd.f32 %v254, %v255
    %v257 = vrot.slane %v256, 1
    %v258 = vadd.f32 %v256, %v257
    %v263 = vsel %vm170, %v213, %v195
    %v264 = vsel %vm170, %v222, %v204
    %v271 = vsel %vm179, %v249, %v231
    %v272 = vsel %vm179, %v258, %v240
    %v275 = vsel %vm184, %v263, %v271
    %v276 = vsel %vm184, %v264, %v272
    %v277 = vmul.f32 %v275, 0.03125
    %v278 = vmul.f32 %v276, 0.03125
    %v279 = vld [vmem:[%s3] ss:$8 sm:$0x3]
    %280 = vrot.lane.b32.xlu0 %v185, 3
    %v281 = vpop.permute.xlu0 %280
    %282 = vrot.lane.b32.xlu0 %v186, 3
    %v283 = vpop.permute.xlu0 %282
    %v284 = vlaneseq
    %v285 = vand.u32 %v284, 127
    %vm286 = vcmp.lt.s32.totalorder %v285, 3
    %v287 = vsel %vm286, %v281, %v283
    %v288 = vsel %vm286, %v283, %v281
    %v290 = vlaneseq
    %v291 = vshrl.u32 %v290, 7
    %v292 = vsub.s32 0, %v291
    %v293 = vrot.slane %v279, %v292
    %v294 = vlaneseq
    %v295 = vshrl.u32 %v294, 7
    %v296 = vsub.s32 1, %v295
    %v297 = vrot.slane %v279, %v296
    %v300 = vmul.f32 %v293, %v288
    %v301 = vmul.f32 %v297, %v287
    %302 = vrot.lane.b32.xlu0 %v277, 3
    %v303 = vpop.permute.xlu0 %302
    %304 = vrot.lane.b32.xlu0 %v278, 3
    %v305 = vpop.permute.xlu0 %304
    %v306 = vsel %vm286, %v303, %v305
    %v307 = vsel %vm286, %v305, %v303
    %v308 = vmul.f32 %v293, %v307
    %v309 = vmul.f32 %v297, %v306
    %s310 = sld [smem:[#allocation3]]
    %v311 = vstv %s310
    %v312 = vmul.f32 %v311, %v300
    %v313 = vmul.f32 %v311, %v301
    %s314 = sld [smem:[#allocation3 + $0x31]]
    %v315 = vstv %s314
    %v316 = vmul.f32 %v315, %v308
    %v317 = vmul.f32 %v315, %v309
    %v318 = vadd.f32 %v312, %v316
    %v319 = vadd.f32 %v313, %v317
    %s320 = sld [smem:[#allocation3 + $0x7]]
    %v321 = vstv %s320
    %v322 = vmul.f32 %v321, %v300
    %v323 = vmul.f32 %v321, %v301
    %s324 = sld [smem:[#allocation3 + $0x38]]
    %v325 = vstv %s324
    %v326 = vmul.f32 %v325, %v308
    %v327 = vmul.f32 %v325, %v309
    %v328 = vadd.f32 %v322, %v326
    %v329 = vadd.f32 %v323, %v327
    %s330 = sld [smem:[#allocation3 + $0xe]]
    %v331 = vstv %s330
    %v332 = vmul.f32 %v331, %v300
    %v333 = vmul.f32 %v331, %v301
    %s334 = sld [smem:[#allocation3 + $0x3f]]
    %v335 = vstv %s334
    %v336 = vmul.f32 %v335, %v308
    %v337 = vmul.f32 %v335, %v309
    %v338 = vadd.f32 %v332, %v336
    %v339 = vadd.f32 %v333, %v337
    %s340 = sld [smem:[#allocation3 + $0x15]]
    %v341 = vstv %s340
    %v342 = vmul.f32 %v341, %v300
    %v343 = vmul.f32 %v341, %v301
    %s344 = sld [smem:[#allocation3 + $0x46]]
    %v345 = vstv %s344
    %v346 = vmul.f32 %v345, %v308
    %v347 = vmul.f32 %v345, %v309
    %v348 = vadd.f32 %v342, %v346
    %v349 = vadd.f32 %v343, %v347
    %s350 = sld [smem:[#allocation3 + $0x1c]]
    %v351 = vstv %s350
    %v352 = vmul.f32 %v351, %v300
    %v353 = vmul.f32 %v351, %v301
    %s354 = sld [smem:[#allocation3 + $0x4d]]
    %v355 = vstv %s354
    %v356 = vmul.f32 %v355, %v308
    %v357 = vmul.f32 %v355, %v309
    %v358 = vadd.f32 %v352, %v356
    %v359 = vadd.f32 %v353, %v357
    %s360 = sld [smem:[#allocation3 + $0x23]]
    %v361 = vstv %s360
    %v362 = vmul.f32 %v361, %v300
    %v363 = vmul.f32 %v361, %v301
    %s364 = sld [smem:[#allocation3 + $0x54]]
    %v365 = vstv %s364
    %v366 = vmul.f32 %v365, %v308
    %v367 = vmul.f32 %v365, %v309
    %v368 = vadd.f32 %v362, %v366
    %v369 = vadd.f32 %v363, %v367
    %s370 = sld [smem:[#allocation3 + $0x2a]]
    %v371 = vstv %s370
    %v372 = vmul.f32 %v371, %v300
    %v373 = vmul.f32 %v371, %v301
    %s374 = sld [smem:[#allocation3 + $0x5b]]
    %v375 = vstv %s374
    %v376 = vmul.f32 %v375, %v308
    %v377 = vmul.f32 %v375, %v309
    %v378 = vadd.f32 %v372, %v376
    %v379 = vadd.f32 %v373, %v377
    %s380 = scalar_lea.vmem %s3, 1
    %v381 = vld [vmem:[%s380] ss:$8 sm:$0x3]
    %382 = vrot.lane.b32.xlu0 %v185, 2
    %v383 = vpop.permute.xlu0 %382
    %384 = vrot.lane.b32.xlu0 %v186, 2
    %v385 = vpop.permute.xlu0 %384
    %vm386 = vcmp.lt.s32.totalorder %v285, 2
    %v387 = vsel %vm386, %v383, %v385
    %v388 = vsel %vm386, %v385, %v383
    %v390 = vlaneseq
    %v391 = vshrl.u32 %v390, 7
    %v392 = vsub.s32 0, %v391
    %v393 = vrot.slane %v381, %v392
    %v394 = vlaneseq
    %v395 = vshrl.u32 %v394, 7
    %v396 = vsub.s32 1, %v395
    %v397 = vrot.slane %v381, %v396
    %v400 = vmul.f32 %v393, %v388
    %v401 = vmul.f32 %v397, %v387
    %402 = vrot.lane.b32.xlu0 %v277, 2
    %v403 = vpop.permute.xlu0 %402
    %404 = vrot.lane.b32.xlu0 %v278, 2
    %v405 = vpop.permute.xlu0 %404
    %v406 = vsel %vm386, %v403, %v405
    %v407 = vsel %vm386, %v405, %v403
    %v408 = vmul.f32 %v393, %v407
    %v409 = vmul.f32 %v397, %v406
    %s410 = sld [smem:[#allocation3 + $0x1]]
    %v411 = vstv %s410
    %v412 = vmul.f32 %v411, %v400
    %v413 = vmul.f32 %v411, %v401
    %s414 = sld [smem:[#allocation3 + $0x32]]
    %v415 = vstv %s414
    %v416 = vmul.f32 %v415, %v408
    %v417 = vmul.f32 %v415, %v409
    %v418 = vadd.f32 %v412, %v416
    %v419 = vadd.f32 %v413, %v417
    %v420 = vadd.f32 %v318, %v418
    %v421 = vadd.f32 %v319, %v419
    %s422 = sld [smem:[#allocation3 + $0x8]]
    %v423 = vstv %s422
    %v424 = vmul.f32 %v423, %v400
    %v425 = vmul.f32 %v423, %v401
    %s426 = sld [smem:[#allocation3 + $0x39]]
    %v427 = vstv %s426
    %v428 = vmul.f32 %v427, %v408
    %v429 = vmul.f32 %v427, %v409
    %v430 = vadd.f32 %v424, %v428
    %v431 = vadd.f32 %v425, %v429
    %v432 = vadd.f32 %v328, %v430
    %v433 = vadd.f32 %v329, %v431
    %s434 = sld [smem:[#allocation3 + $0xf]]
    %v435 = vstv %s434
    %v436 = vmul.f32 %v435, %v400
    %v437 = vmul.f32 %v435, %v401
    %s438 = sld [smem:[#allocation3 + $0x40]]
    %v439 = vstv %s438
    %v440 = vmul.f32 %v439, %v408
    %v441 = vmul.f32 %v439, %v409
    %v442 = vadd.f32 %v436, %v440
    %v443 = vadd.f32 %v437, %v441
    %v444 = vadd.f32 %v338, %v442
    %v445 = vadd.f32 %v339, %v443
    %s446 = sld [smem:[#allocation3 + $0x16]]
    %v447 = vstv %s446
    %v448 = vmul.f32 %v447, %v400
    %v449 = vmul.f32 %v447, %v401
    %s450 = sld [smem:[#allocation3 + $0x47]]
    %v451 = vstv %s450
    %v452 = vmul.f32 %v451, %v408
    %v453 = vmul.f32 %v451, %v409
    %v454 = vadd.f32 %v448, %v452
    %v455 = vadd.f32 %v449, %v453
    %v456 = vadd.f32 %v348, %v454
    %v457 = vadd.f32 %v349, %v455
    %s458 = sld [smem:[#allocation3 + $0x1d]]
    %v459 = vstv %s458
    %v460 = vmul.f32 %v459, %v400
    %v461 = vmul.f32 %v459, %v401
    %s462 = sld [smem:[#allocation3 + $0x4e]]
    %v463 = vstv %s462
    %v464 = vmul.f32 %v463, %v408
    %v465 = vmul.f32 %v463, %v409
    %v466 = vadd.f32 %v460, %v464
    %v467 = vadd.f32 %v461, %v465
    %v468 = vadd.f32 %v358, %v466
    %v469 = vadd.f32 %v359, %v467
    %s470 = sld [smem:[#allocation3 + $0x24]]
    %v471 = vstv %s470
    %v472 = vmul.f32 %v471, %v400
    %v473 = vmul.f32 %v471, %v401
    %s474 = sld [smem:[#allocation3 + $0x55]]
    %v475 = vstv %s474
    %v476 = vmul.f32 %v475, %v408
    %v477 = vmul.f32 %v475, %v409
    %v478 = vadd.f32 %v472, %v476
    %v479 = vadd.f32 %v473, %v477
    %v480 = vadd.f32 %v368, %v478
    %v481 = vadd.f32 %v369, %v479
    %s482 = sld [smem:[#allocation3 + $0x2b]]
    %v483 = vstv %s482
    %v484 = vmul.f32 %v483, %v400
    %v485 = vmul.f32 %v483, %v401
    %s486 = sld [smem:[#allocation3 + $0x5c]]
    %v487 = vstv %s486
    %v488 = vmul.f32 %v487, %v408
    %v489 = vmul.f32 %v487, %v409
    %v490 = vadd.f32 %v484, %v488
    %v491 = vadd.f32 %v485, %v489
    %v492 = vadd.f32 %v378, %v490
    %v493 = vadd.f32 %v379, %v491
    %s494 = scalar_lea.vmem %s3, 2
    %v495 = vld [vmem:[%s494] ss:$8 sm:$0x3]
    %496 = vrot.lane.b32.xlu0 %v185, 1
    %v497 = vpop.permute.xlu0 %496
    %498 = vrot.lane.b32.xlu0 %v186, 1
    %v499 = vpop.permute.xlu0 %498
    %vm500 = vcmp.lt.s32.totalorder %v285, 1
    %v501 = vsel %vm500, %v497, %v499
    %v502 = vsel %vm500, %v499, %v497
    %v504 = vlaneseq
    %v505 = vshrl.u32 %v504, 7
    %v506 = vsub.s32 0, %v505
    %v507 = vrot.slane %v495, %v506
    %v508 = vlaneseq
    %v509 = vshrl.u32 %v508, 7
    %v510 = vsub.s32 1, %v509
    %v511 = vrot.slane %v495, %v510
    %v514 = vmul.f32 %v507, %v502
    %v515 = vmul.f32 %v511, %v501
    %516 = vrot.lane.b32.xlu0 %v277, 1
    %v517 = vpop.permute.xlu0 %516
    %518 = vrot.lane.b32.xlu0 %v278, 1
    %v519 = vpop.permute.xlu0 %518
    %v520 = vsel %vm500, %v517, %v519
    %v521 = vsel %vm500, %v519, %v517
    %v522 = vmul.f32 %v507, %v521
    %v523 = vmul.f32 %v511, %v520
    %s524 = sld [smem:[#allocation3 + $0x2]]
    %v525 = vstv %s524
    %v526 = vmul.f32 %v525, %v514
    %v527 = vmul.f32 %v525, %v515
    %s528 = sld [smem:[#allocation3 + $0x33]]
    %v529 = vstv %s528
    %v530 = vmul.f32 %v529, %v522
    %v531 = vmul.f32 %v529, %v523
    %v532 = vadd.f32 %v526, %v530
    %v533 = vadd.f32 %v527, %v531
    %v534 = vadd.f32 %v420, %v532
    %v535 = vadd.f32 %v421, %v533
    %s536 = sld [smem:[#allocation3 + $0x9]]
    %v537 = vstv %s536
    %v538 = vmul.f32 %v537, %v514
    %v539 = vmul.f32 %v537, %v515
    %s540 = sld [smem:[#allocation3 + $0x3a]]
    %v541 = vstv %s540
    %v542 = vmul.f32 %v541, %v522
    %v543 = vmul.f32 %v541, %v523
    %v544 = vadd.f32 %v538, %v542
    %v545 = vadd.f32 %v539, %v543
    %v546 = vadd.f32 %v432, %v544
    %v547 = vadd.f32 %v433, %v545
    %s548 = sld [smem:[#allocation3 + $0x10]]
    %v549 = vstv %s548
    %v550 = vmul.f32 %v549, %v514
    %v551 = vmul.f32 %v549, %v515
    %s552 = sld [smem:[#allocation3 + $0x41]]
    %v553 = vstv %s552
    %v554 = vmul.f32 %v553, %v522
    %v555 = vmul.f32 %v553, %v523
    %v556 = vadd.f32 %v550, %v554
    %v557 = vadd.f32 %v551, %v555
    %v558 = vadd.f32 %v444, %v556
    %v559 = vadd.f32 %v445, %v557
    %s560 = sld [smem:[#allocation3 + $0x17]]
    %v561 = vstv %s560
    %v562 = vmul.f32 %v561, %v514
    %v563 = vmul.f32 %v561, %v515
    %s564 = sld [smem:[#allocation3 + $0x48]]
    %v565 = vstv %s564
    %v566 = vmul.f32 %v565, %v522
    %v567 = vmul.f32 %v565, %v523
    %v568 = vadd.f32 %v562, %v566
    %v569 = vadd.f32 %v563, %v567
    %v570 = vadd.f32 %v456, %v568
    %v571 = vadd.f32 %v457, %v569
    %s572 = sld [smem:[#allocation3 + $0x1e]]
    %v573 = vstv %s572
    %v574 = vmul.f32 %v573, %v514
    %v575 = vmul.f32 %v573, %v515
    %s576 = sld [smem:[#allocation3 + $0x4f]]
    %v577 = vstv %s576
    %v578 = vmul.f32 %v577, %v522
    %v579 = vmul.f32 %v577, %v523
    %v580 = vadd.f32 %v574, %v578
    %v581 = vadd.f32 %v575, %v579
    %v582 = vadd.f32 %v468, %v580
    %v583 = vadd.f32 %v469, %v581
    %s584 = sld [smem:[#allocation3 + $0x25]]
    %v585 = vstv %s584
    %v586 = vmul.f32 %v585, %v514
    %v587 = vmul.f32 %v585, %v515
    %s588 = sld [smem:[#allocation3 + $0x56]]
    %v589 = vstv %s588
    %v590 = vmul.f32 %v589, %v522
    %v591 = vmul.f32 %v589, %v523
    %v592 = vadd.f32 %v586, %v590
    %v593 = vadd.f32 %v587, %v591
    %v594 = vadd.f32 %v480, %v592
    %v595 = vadd.f32 %v481, %v593
    %s596 = sld [smem:[#allocation3 + $0x2c]]
    %v597 = vstv %s596
    %v598 = vmul.f32 %v597, %v514
    %v599 = vmul.f32 %v597, %v515
    %s600 = sld [smem:[#allocation3 + $0x5d]]
    %v601 = vstv %s600
    %v602 = vmul.f32 %v601, %v522
    %v603 = vmul.f32 %v601, %v523
    %v604 = vadd.f32 %v598, %v602
    %v605 = vadd.f32 %v599, %v603
    %v606 = vadd.f32 %v492, %v604
    %v607 = vadd.f32 %v493, %v605
    %s608 = scalar_lea.vmem %s3, 3
    %v609 = vld [vmem:[%s608] ss:$8 sm:$0x3]
    %v611 = vlaneseq
    %v612 = vshrl.u32 %v611, 7
    %v613 = vsub.s32 0, %v612
    %v614 = vrot.slane %v609, %v613
    %v615 = vlaneseq
    %v616 = vshrl.u32 %v615, 7
    %v617 = vsub.s32 1, %v616
    %v618 = vrot.slane %v609, %v617
    %v621 = vmul.f32 %v614, %v185
    %v622 = vmul.f32 %v618, %v186
    %v623 = vmul.f32 %v614, %v277
    %v624 = vmul.f32 %v618, %v278
    %s625 = sld [smem:[#allocation3 + $0x3]]
    %v626 = vstv %s625
    %v627 = vmul.f32 %v626, %v621
    %v628 = vmul.f32 %v626, %v622
    %s629 = sld [smem:[#allocation3 + $0x34]]
    %v630 = vstv %s629
    %v631 = vmul.f32 %v630, %v623
    %v632 = vmul.f32 %v630, %v624
    %v633 = vadd.f32 %v627, %v631
    %v634 = vadd.f32 %v628, %v632
    %v635 = vadd.f32 %v534, %v633
    %v636 = vadd.f32 %v535, %v634
    %s637 = sld [smem:[#allocation3 + $0xa]]
    %v638 = vstv %s637
    %v639 = vmul.f32 %v638, %v621
    %v640 = vmul.f32 %v638, %v622
    %s641 = sld [smem:[#allocation3 + $0x3b]]
    %v642 = vstv %s641
    %v643 = vmul.f32 %v642, %v623
    %v644 = vmul.f32 %v642, %v624
    %v645 = vadd.f32 %v639, %v643
    %v646 = vadd.f32 %v640, %v644
    %v647 = vadd.f32 %v546, %v645
    %v648 = vadd.f32 %v547, %v646
    %s649 = sld [smem:[#allocation3 + $0x11]]
    %v650 = vstv %s649
    %v651 = vmul.f32 %v650, %v621
    %v652 = vmul.f32 %v650, %v622
    %s653 = sld [smem:[#allocation3 + $0x42]]
    %v654 = vstv %s653
    %v655 = vmul.f32 %v654, %v623
    %v656 = vmul.f32 %v654, %v624
    %v657 = vadd.f32 %v651, %v655
    %v658 = vadd.f32 %v652, %v656
    %v659 = vadd.f32 %v558, %v657
    %v660 = vadd.f32 %v559, %v658
    %s661 = sld [smem:[#allocation3 + $0x18]]
    %v662 = vstv %s661
    %v663 = vmul.f32 %v662, %v621
    %v664 = vmul.f32 %v662, %v622
    %s665 = sld [smem:[#allocation3 + $0x49]]
    %v666 = vstv %s665
    %v667 = vmul.f32 %v666, %v623
    %v668 = vmul.f32 %v666, %v624
    %v669 = vadd.f32 %v663, %v667
    %v670 = vadd.f32 %v664, %v668
    %v671 = vadd.f32 %v570, %v669
    %v672 = vadd.f32 %v571, %v670
    %s673 = sld [smem:[#allocation3 + $0x1f]]
    %v674 = vstv %s673
    %v675 = vmul.f32 %v674, %v621
    %v676 = vmul.f32 %v674, %v622
    %s677 = sld [smem:[#allocation3 + $0x50]]
    %v678 = vstv %s677
    %v679 = vmul.f32 %v678, %v623
    %v680 = vmul.f32 %v678, %v624
    %v681 = vadd.f32 %v675, %v679
    %v682 = vadd.f32 %v676, %v680
    %v683 = vadd.f32 %v582, %v681
    %v684 = vadd.f32 %v583, %v682
    %s685 = sld [smem:[#allocation3 + $0x26]]
    %v686 = vstv %s685
    %v687 = vmul.f32 %v686, %v621
    %v688 = vmul.f32 %v686, %v622
    %s689 = sld [smem:[#allocation3 + $0x57]]
    %v690 = vstv %s689
    %v691 = vmul.f32 %v690, %v623
    %v692 = vmul.f32 %v690, %v624
    %v693 = vadd.f32 %v687, %v691
    %v694 = vadd.f32 %v688, %v692
    %v695 = vadd.f32 %v594, %v693
    %v696 = vadd.f32 %v595, %v694
    %s697 = sld [smem:[#allocation3 + $0x2d]]
    %v698 = vstv %s697
    %v699 = vmul.f32 %v698, %v621
    %v700 = vmul.f32 %v698, %v622
    %s701 = sld [smem:[#allocation3 + $0x5e]]
    %v702 = vstv %s701
    %v703 = vmul.f32 %v702, %v623
    %v704 = vmul.f32 %v702, %v624
    %v705 = vadd.f32 %v699, %v703
    %v706 = vadd.f32 %v700, %v704
    %v707 = vadd.f32 %v606, %v705
    %v708 = vadd.f32 %v607, %v706
    %s709 = scalar_lea.vmem %s3, 4
    %v710 = vld [vmem:[%s709] ss:$8 sm:$0x3]
    %711 = vrot.lane.b32.xlu0 %v185, 127
    %v712 = vpop.permute.xlu0 %711
    %713 = vrot.lane.b32.xlu0 %v186, 127
    %v714 = vpop.permute.xlu0 %713
    %vm715 = vcmp.lt.s32.totalorder %v285, 127
    %v716 = vsel %vm715, %v712, %v714
    %v717 = vsel %vm715, %v714, %v712
    %v719 = vlaneseq
    %v720 = vshrl.u32 %v719, 7
    %v721 = vsub.s32 0, %v720
    %v722 = vrot.slane %v710, %v721
    %v723 = vlaneseq
    %v724 = vshrl.u32 %v723, 7
    %v725 = vsub.s32 1, %v724
    %v726 = vrot.slane %v710, %v725
    %v729 = vmul.f32 %v722, %v716
    %v730 = vmul.f32 %v726, %v717
    %731 = vrot.lane.b32.xlu0 %v277, 127
    %v732 = vpop.permute.xlu0 %731
    %733 = vrot.lane.b32.xlu0 %v278, 127
    %v734 = vpop.permute.xlu0 %733
    %v735 = vsel %vm715, %v732, %v734
    %v736 = vsel %vm715, %v734, %v732
    %v737 = vmul.f32 %v722, %v735
    %v738 = vmul.f32 %v726, %v736
    %s739 = sld [smem:[#allocation3 + $0x4]]
    %v740 = vstv %s739
    %v741 = vmul.f32 %v740, %v729
    %v742 = vmul.f32 %v740, %v730
    %s743 = sld [smem:[#allocation3 + $0x35]]
    %v744 = vstv %s743
    %v745 = vmul.f32 %v744, %v737
    %v746 = vmul.f32 %v744, %v738
    %v747 = vadd.f32 %v741, %v745
    %v748 = vadd.f32 %v742, %v746
    %v749 = vadd.f32 %v635, %v747
    %v750 = vadd.f32 %v636, %v748
    %s751 = sld [smem:[#allocation3 + $0xb]]
    %v752 = vstv %s751
    %v753 = vmul.f32 %v752, %v729
    %v754 = vmul.f32 %v752, %v730
    %s755 = sld [smem:[#allocation3 + $0x3c]]
    %v756 = vstv %s755
    %v757 = vmul.f32 %v756, %v737
    %v758 = vmul.f32 %v756, %v738
    %v759 = vadd.f32 %v753, %v757
    %v760 = vadd.f32 %v754, %v758
    %v761 = vadd.f32 %v647, %v759
    %v762 = vadd.f32 %v648, %v760
    %s763 = sld [smem:[#allocation3 + $0x12]]
    %v764 = vstv %s763
    %v765 = vmul.f32 %v764, %v729
    %v766 = vmul.f32 %v764, %v730
    %s767 = sld [smem:[#allocation3 + $0x43]]
    %v768 = vstv %s767
    %v769 = vmul.f32 %v768, %v737
    %v770 = vmul.f32 %v768, %v738
    %v771 = vadd.f32 %v765, %v769
    %v772 = vadd.f32 %v766, %v770
    %v773 = vadd.f32 %v659, %v771
    %v774 = vadd.f32 %v660, %v772
    %s775 = sld [smem:[#allocation3 + $0x19]]
    %v776 = vstv %s775
    %v777 = vmul.f32 %v776, %v729
    %v778 = vmul.f32 %v776, %v730
    %s779 = sld [smem:[#allocation3 + $0x4a]]
    %v780 = vstv %s779
    %v781 = vmul.f32 %v780, %v737
    %v782 = vmul.f32 %v780, %v738
    %v783 = vadd.f32 %v777, %v781
    %v784 = vadd.f32 %v778, %v782
    %v785 = vadd.f32 %v671, %v783
    %v786 = vadd.f32 %v672, %v784
    %s787 = sld [smem:[#allocation3 + $0x20]]
    %v788 = vstv %s787
    %v789 = vmul.f32 %v788, %v729
    %v790 = vmul.f32 %v788, %v730
    %s791 = sld [smem:[#allocation3 + $0x51]]
    %v792 = vstv %s791
    %v793 = vmul.f32 %v792, %v737
    %v794 = vmul.f32 %v792, %v738
    %v795 = vadd.f32 %v789, %v793
    %v796 = vadd.f32 %v790, %v794
    %v797 = vadd.f32 %v683, %v795
    %v798 = vadd.f32 %v684, %v796
    %s799 = sld [smem:[#allocation3 + $0x27]]
    %v800 = vstv %s799
    %v801 = vmul.f32 %v800, %v729
    %v802 = vmul.f32 %v800, %v730
    %s803 = sld [smem:[#allocation3 + $0x58]]
    %v804 = vstv %s803
    %v805 = vmul.f32 %v804, %v737
    %v806 = vmul.f32 %v804, %v738
    %v807 = vadd.f32 %v801, %v805
    %v808 = vadd.f32 %v802, %v806
    %v809 = vadd.f32 %v695, %v807
    %v810 = vadd.f32 %v696, %v808
    %s811 = sld [smem:[#allocation3 + $0x2e]]
    %v812 = vstv %s811
    %v813 = vmul.f32 %v812, %v729
    %v814 = vmul.f32 %v812, %v730
    %s815 = sld [smem:[#allocation3 + $0x5f]]
    %v816 = vstv %s815
    %v817 = vmul.f32 %v816, %v737
    %v818 = vmul.f32 %v816, %v738
    %v819 = vadd.f32 %v813, %v817
    %v820 = vadd.f32 %v814, %v818
    %v821 = vadd.f32 %v707, %v819
    %v822 = vadd.f32 %v708, %v820
    %s823 = scalar_lea.vmem %s3, 5
    %v824 = vld [vmem:[%s823] ss:$8 sm:$0x3]
    %825 = vrot.lane.b32.xlu0 %v185, 126
    %v826 = vpop.permute.xlu0 %825
    %827 = vrot.lane.b32.xlu0 %v186, 126
    %v828 = vpop.permute.xlu0 %827
    %vm829 = vcmp.lt.s32.totalorder %v285, 126
    %v830 = vsel %vm829, %v826, %v828
    %v831 = vsel %vm829, %v828, %v826
    %v833 = vlaneseq
    %v834 = vshrl.u32 %v833, 7
    %v835 = vsub.s32 0, %v834
    %v836 = vrot.slane %v824, %v835
    %v837 = vlaneseq
    %v838 = vshrl.u32 %v837, 7
    %v839 = vsub.s32 1, %v838
    %v840 = vrot.slane %v824, %v839
    %v843 = vmul.f32 %v836, %v830
    %v844 = vmul.f32 %v840, %v831
    %845 = vrot.lane.b32.xlu0 %v277, 126
    %v846 = vpop.permute.xlu0 %845
    %847 = vrot.lane.b32.xlu0 %v278, 126
    %v848 = vpop.permute.xlu0 %847
    %v849 = vsel %vm829, %v846, %v848
    %v850 = vsel %vm829, %v848, %v846
    %v851 = vmul.f32 %v836, %v849
    %v852 = vmul.f32 %v840, %v850
    %s853 = sld [smem:[#allocation3 + $0x5]]
    %v854 = vstv %s853
    %v855 = vmul.f32 %v854, %v843
    %v856 = vmul.f32 %v854, %v844
    %s857 = sld [smem:[#allocation3 + $0x36]]
    %v858 = vstv %s857
    %v859 = vmul.f32 %v858, %v851
    %v860 = vmul.f32 %v858, %v852
    %v861 = vadd.f32 %v855, %v859
    %v862 = vadd.f32 %v856, %v860
    %v863 = vadd.f32 %v749, %v861
    %v864 = vadd.f32 %v750, %v862
    %s865 = sld [smem:[#allocation3 + $0xc]]
    %v866 = vstv %s865
    %v867 = vmul.f32 %v866, %v843
    %v868 = vmul.f32 %v866, %v844
    %s869 = sld [smem:[#allocation3 + $0x3d]]
    %v870 = vstv %s869
    %v871 = vmul.f32 %v870, %v851
    %v872 = vmul.f32 %v870, %v852
    %v873 = vadd.f32 %v867, %v871
    %v874 = vadd.f32 %v868, %v872
    %v875 = vadd.f32 %v761, %v873
    %v876 = vadd.f32 %v762, %v874
    %s877 = sld [smem:[#allocation3 + $0x13]]
    %v878 = vstv %s877
    %v879 = vmul.f32 %v878, %v843
    %v880 = vmul.f32 %v878, %v844
    %s881 = sld [smem:[#allocation3 + $0x44]]
    %v882 = vstv %s881
    %v883 = vmul.f32 %v882, %v851
    %v884 = vmul.f32 %v882, %v852
    %v885 = vadd.f32 %v879, %v883
    %v886 = vadd.f32 %v880, %v884
    %v887 = vadd.f32 %v773, %v885
    %v888 = vadd.f32 %v774, %v886
    %s889 = sld [smem:[#allocation3 + $0x1a]]
    %v890 = vstv %s889
    %v891 = vmul.f32 %v890, %v843
    %v892 = vmul.f32 %v890, %v844
    %s893 = sld [smem:[#allocation3 + $0x4b]]
    %v894 = vstv %s893
    %v895 = vmul.f32 %v894, %v851
    %v896 = vmul.f32 %v894, %v852
    %v897 = vadd.f32 %v891, %v895
    %v898 = vadd.f32 %v892, %v896
    %v899 = vadd.f32 %v785, %v897
    %v900 = vadd.f32 %v786, %v898
    %s901 = sld [smem:[#allocation3 + $0x21]]
    %v902 = vstv %s901
    %v903 = vmul.f32 %v902, %v843
    %v904 = vmul.f32 %v902, %v844
    %s905 = sld [smem:[#allocation3 + $0x52]]
    %v906 = vstv %s905
    %v907 = vmul.f32 %v906, %v851
    %v908 = vmul.f32 %v906, %v852
    %v909 = vadd.f32 %v903, %v907
    %v910 = vadd.f32 %v904, %v908
    %v911 = vadd.f32 %v797, %v909
    %v912 = vadd.f32 %v798, %v910
    %s913 = sld [smem:[#allocation3 + $0x28]]
    %v914 = vstv %s913
    %v915 = vmul.f32 %v914, %v843
    %v916 = vmul.f32 %v914, %v844
    %s917 = sld [smem:[#allocation3 + $0x59]]
    %v918 = vstv %s917
    %v919 = vmul.f32 %v918, %v851
    %v920 = vmul.f32 %v918, %v852
    %v921 = vadd.f32 %v915, %v919
    %v922 = vadd.f32 %v916, %v920
    %v923 = vadd.f32 %v809, %v921
    %v924 = vadd.f32 %v810, %v922
    %s925 = sld [smem:[#allocation3 + $0x2f]]
    %v926 = vstv %s925
    %v927 = vmul.f32 %v926, %v843
    %v928 = vmul.f32 %v926, %v844
    %s929 = sld [smem:[#allocation3 + $0x60]]
    %v930 = vstv %s929
    %v931 = vmul.f32 %v930, %v851
    %v932 = vmul.f32 %v930, %v852
    %v933 = vadd.f32 %v927, %v931
    %v934 = vadd.f32 %v928, %v932
    %v935 = vadd.f32 %v821, %v933
    %v936 = vadd.f32 %v822, %v934
    %s937 = scalar_lea.vmem %s3, 6
    %v938 = vld [vmem:[%s937] ss:$8 sm:$0x3]
    %939 = vrot.lane.b32.xlu0 %v185, 125
    %v940 = vpop.permute.xlu0 %939
    %941 = vrot.lane.b32.xlu0 %v186, 125
    %v942 = vpop.permute.xlu0 %941
    %vm943 = vcmp.lt.s32.totalorder %v285, 125
    %v944 = vsel %vm943, %v940, %v942
    %v945 = vsel %vm943, %v942, %v940
    %v947 = vlaneseq
    %v948 = vshrl.u32 %v947, 7
    %v949 = vsub.s32 0, %v948
    %v950 = vrot.slane %v938, %v949
    %v951 = vlaneseq
    %v952 = vshrl.u32 %v951, 7
    %v953 = vsub.s32 1, %v952
    %v954 = vrot.slane %v938, %v953
    %v957 = vmul.f32 %v950, %v944
    %v958 = vmul.f32 %v954, %v945
    %959 = vrot.lane.b32.xlu0 %v277, 125
    %v960 = vpop.permute.xlu0 %959
    %961 = vrot.lane.b32.xlu0 %v278, 125
    %v962 = vpop.permute.xlu0 %961
    %v963 = vsel %vm943, %v960, %v962
    %v964 = vsel %vm943, %v962, %v960
    %v965 = vmul.f32 %v950, %v963
    %v966 = vmul.f32 %v954, %v964
    %s967 = sld [smem:[#allocation3 + $0x6]]
    %v968 = vstv %s967
    %v969 = vmul.f32 %v968, %v957
    %v970 = vmul.f32 %v968, %v958
    %s971 = sld [smem:[#allocation3 + $0x37]]
    %v972 = vstv %s971
    %v973 = vmul.f32 %v972, %v965
    %v974 = vmul.f32 %v972, %v966
    %v975 = vadd.f32 %v969, %v973
    %v976 = vadd.f32 %v970, %v974
    %v977 = vadd.f32 %v863, %v975
    %v978 = vadd.f32 %v864, %v976
    %s979 = sld [smem:[#allocation3 + $0xd]]
    %v980 = vstv %s979
    %v981 = vmul.f32 %v980, %v957
    %v982 = vmul.f32 %v980, %v958
    %s983 = sld [smem:[#allocation3 + $0x3e]]
    %v984 = vstv %s983
    %v985 = vmul.f32 %v984, %v965
    %v986 = vmul.f32 %v984, %v966
    %v987 = vadd.f32 %v981, %v985
    %v988 = vadd.f32 %v982, %v986
    %v989 = vadd.f32 %v875, %v987
    %v990 = vadd.f32 %v876, %v988
    %s991 = sld [smem:[#allocation3 + $0x14]]
    %v992 = vstv %s991
    %v993 = vmul.f32 %v992, %v957
    %v994 = vmul.f32 %v992, %v958
    %s995 = sld [smem:[#allocation3 + $0x45]]
    %v996 = vstv %s995
    %v997 = vmul.f32 %v996, %v965
    %v998 = vmul.f32 %v996, %v966
    %v999 = vadd.f32 %v993, %v997
    %v1000 = vadd.f32 %v994, %v998
    %v1001 = vadd.f32 %v887, %v999
    %v1002 = vadd.f32 %v888, %v1000
    %s1003 = sld [smem:[#allocation3 + $0x1b]]
    %v1004 = vstv %s1003
    %v1005 = vmul.f32 %v1004, %v957
    %v1006 = vmul.f32 %v1004, %v958
    %s1007 = sld [smem:[#allocation3 + $0x4c]]
    %v1008 = vstv %s1007
    %v1009 = vmul.f32 %v1008, %v965
    %v1010 = vmul.f32 %v1008, %v966
    %v1011 = vadd.f32 %v1005, %v1009
    %v1012 = vadd.f32 %v1006, %v1010
    %v1013 = vadd.f32 %v899, %v1011
    %v1014 = vadd.f32 %v900, %v1012
    %s1015 = sld [smem:[#allocation3 + $0x22]]
    %v1016 = vstv %s1015
    %v1017 = vmul.f32 %v1016, %v957
    %v1018 = vmul.f32 %v1016, %v958
    %s1019 = sld [smem:[#allocation3 + $0x53]]
    %v1020 = vstv %s1019
    %v1021 = vmul.f32 %v1020, %v965
    %v1022 = vmul.f32 %v1020, %v966
    %v1023 = vadd.f32 %v1017, %v1021
    %v1024 = vadd.f32 %v1018, %v1022
    %v1025 = vadd.f32 %v911, %v1023
    %v1026 = vadd.f32 %v912, %v1024
    %s1027 = sld [smem:[#allocation3 + $0x29]]
    %v1028 = vstv %s1027
    %v1029 = vmul.f32 %v1028, %v957
    %v1030 = vmul.f32 %v1028, %v958
    %s1031 = sld [smem:[#allocation3 + $0x5a]]
    %v1032 = vstv %s1031
    %v1033 = vmul.f32 %v1032, %v965
    %v1034 = vmul.f32 %v1032, %v966
    %v1035 = vadd.f32 %v1029, %v1033
    %v1036 = vadd.f32 %v1030, %v1034
    %v1037 = vadd.f32 %v923, %v1035
    %v1038 = vadd.f32 %v924, %v1036
    %s1039 = sld [smem:[#allocation3 + $0x30]]
    %v1040 = vstv %s1039
    %v1041 = vmul.f32 %v1040, %v957
    %v1042 = vmul.f32 %v1040, %v958
    %s1043 = sld [smem:[#allocation3 + $0x61]]
    %v1044 = vstv %s1043
    %v1045 = vmul.f32 %v1044, %v965
    %v1046 = vmul.f32 %v1044, %v966
    %v1047 = vadd.f32 %v1041, %v1045
    %v1048 = vadd.f32 %v1042, %v1046
    %v1049 = vadd.f32 %v935, %v1047
    %v1050 = vadd.f32 %v936, %v1048
    %s1051 = scalar_lea.vmem %s3, 7
    %v1052 = vld [vmem:[%s1051] ss:$8 sm:$0x3]
    %1053 = vrot.lane.b32.xlu0 %v977, 48
    %v1054 = vpop.permute.xlu0 %1053
    %1055 = vrot.lane.b32.xlu0 %v978, 48
    %v1056 = vpop.permute.xlu0 %1055
    %vm1057 = vcmp.lt.s32.totalorder %v285, 48
    %v1058 = vsel %vm1057, %v1054, %v1056
    %v1059 = vsel %vm1057, %v1056, %v1054
    %v1061 = vlaneseq
    %v1062 = vshrl.u32 %v1061, 7
    %v1063 = vsub.s32 0, %v1062
    %v1064 = vrot.slane %v1052, %v1063
    %v1065 = vlaneseq
    %v1066 = vshrl.u32 %v1065, 7
    %v1067 = vsub.s32 1, %v1066
    %v1068 = vrot.slane %v1052, %v1067
    %v1071 = vmul.f32 %v1064, %v1059
    %v1072 = vmul.f32 %v1068, %v1058
    %s1073 = scalar_lea.vmem %s3, 16
    %v1074 = vld [vmem:[%s1073] ss:$8 sm:$0x3]
    %1075 = vrot.lane.b32.xlu0 %v989, 32
    %v1076 = vpop.permute.xlu0 %1075
    %1077 = vrot.lane.b32.xlu0 %v990, 32
    %v1078 = vpop.permute.xlu0 %1077
    %vm1079 = vcmp.lt.s32.totalorder %v285, 32
    %v1080 = vsel %vm1079, %v1076, %v1078
    %v1081 = vsel %vm1079, %v1078, %v1076
    %v1083 = vlaneseq
    %v1084 = vshrl.u32 %v1083, 7
    %v1085 = vsub.s32 0, %v1084
    %v1086 = vrot.slane %v1074, %v1085
    %v1087 = vlaneseq
    %v1088 = vshrl.u32 %v1087, 7
    %v1089 = vsub.s32 1, %v1088
    %v1090 = vrot.slane %v1074, %v1089
    %v1093 = vmul.f32 %v1086, %v1081
    %v1094 = vmul.f32 %v1090, %v1080
    %v1095 = vadd.f32 %v1071, %v1093
    %v1096 = vadd.f32 %v1072, %v1094
    %s1097 = scalar_lea.vmem %s3, 17
    %v1098 = vld [vmem:[%s1097] ss:$8 sm:$0x3]
    %1099 = vrot.lane.b32.xlu0 %v1001, 16
    %v1100 = vpop.permute.xlu0 %1099
    %1101 = vrot.lane.b32.xlu0 %v1002, 16
    %v1102 = vpop.permute.xlu0 %1101
    %vm1103 = vcmp.lt.s32.totalorder %v285, 16
    %v1104 = vsel %vm1103, %v1100, %v1102
    %v1105 = vsel %vm1103, %v1102, %v1100
    %v1107 = vlaneseq
    %v1108 = vshrl.u32 %v1107, 7
    %v1109 = vsub.s32 0, %v1108
    %v1110 = vrot.slane %v1098, %v1109
    %v1111 = vlaneseq
    %v1112 = vshrl.u32 %v1111, 7
    %v1113 = vsub.s32 1, %v1112
    %v1114 = vrot.slane %v1098, %v1113
    %v1117 = vmul.f32 %v1110, %v1105
    %v1118 = vmul.f32 %v1114, %v1104
    %v1119 = vadd.f32 %v1095, %v1117
    %v1120 = vadd.f32 %v1096, %v1118
    %s1121 = scalar_lea.vmem %s3, 18
    %v1122 = vld [vmem:[%s1121] ss:$8 sm:$0x3]
    %v1124 = vlaneseq
    %v1125 = vshrl.u32 %v1124, 7
    %v1126 = vsub.s32 0, %v1125
    %v1127 = vrot.slane %v1122, %v1126
    %v1128 = vlaneseq
    %v1129 = vshrl.u32 %v1128, 7
    %v1130 = vsub.s32 1, %v1129
    %v1131 = vrot.slane %v1122, %v1130
    %v1134 = vmul.f32 %v1127, %v1013
    %v1135 = vmul.f32 %v1131, %v1014
    %v1136 = vadd.f32 %v1119, %v1134
    %v1137 = vadd.f32 %v1120, %v1135
    %s1138 = scalar_lea.vmem %s3, 19
    %v1139 = vld [vmem:[%s1138] ss:$8 sm:$0x3]
    %1140 = vrot.lane.b32.xlu0 %v1025, 112
    %v1141 = vpop.permute.xlu0 %1140
    %1142 = vrot.lane.b32.xlu0 %v1026, 112
    %v1143 = vpop.permute.xlu0 %1142
    %vm1144 = vcmp.lt.s32.totalorder %v285, 112
    %v1145 = vsel %vm1144, %v1141, %v1143
    %v1146 = vsel %vm1144, %v1143, %v1141
    %v1148 = vlaneseq
    %v1149 = vshrl.u32 %v1148, 7
    %v1150 = vsub.s32 0, %v1149
    %v1151 = vrot.slane %v1139, %v1150
    %v1152 = vlaneseq
    %v1153 = vshrl.u32 %v1152, 7
    %v1154 = vsub.s32 1, %v1153
    %v1155 = vrot.slane %v1139, %v1154
    %v1158 = vmul.f32 %v1151, %v1145
    %v1159 = vmul.f32 %v1155, %v1146
    %v1160 = vadd.f32 %v1136, %v1158
    %v1161 = vadd.f32 %v1137, %v1159
    %s1162 = scalar_lea.vmem %s3, 20
    %v1163 = vld [vmem:[%s1162] ss:$8 sm:$0x3]
    %1164 = vrot.lane.b32.xlu0 %v1037, 96
    %v1165 = vpop.permute.xlu0 %1164
    %1166 = vrot.lane.b32.xlu0 %v1038, 96
    %v1167 = vpop.permute.xlu0 %1166
    %vm1168 = vcmp.lt.s32.totalorder %v285, 96
    %v1169 = vsel %vm1168, %v1165, %v1167
    %v1170 = vsel %vm1168, %v1167, %v1165
    %v1172 = vlaneseq
    %v1173 = vshrl.u32 %v1172, 7
    %v1174 = vsub.s32 0, %v1173
    %v1175 = vrot.slane %v1163, %v1174
    %v1176 = vlaneseq
    %v1177 = vshrl.u32 %v1176, 7
    %v1178 = vsub.s32 1, %v1177
    %v1179 = vrot.slane %v1163, %v1178
    %v1182 = vmul.f32 %v1175, %v1169
    %v1183 = vmul.f32 %v1179, %v1170
    %v1184 = vadd.f32 %v1160, %v1182
    %v1185 = vadd.f32 %v1161, %v1183
    %s1186 = scalar_lea.vmem %s3, 21
    %v1187 = vld [vmem:[%s1186] ss:$8 sm:$0x3]
    %1188 = vrot.lane.b32.xlu0 %v1049, 80
    %v1189 = vpop.permute.xlu0 %1188
    %1190 = vrot.lane.b32.xlu0 %v1050, 80
    %v1191 = vpop.permute.xlu0 %1190
    %vm1192 = vcmp.lt.s32.totalorder %v285, 80
    %v1193 = vsel %vm1192, %v1189, %v1191
    %v1194 = vsel %vm1192, %v1191, %v1189
    %v1196 = vlaneseq
    %v1197 = vshrl.u32 %v1196, 7
    %v1198 = vsub.s32 0, %v1197
    %v1199 = vrot.slane %v1187, %v1198
    %v1200 = vlaneseq
    %v1201 = vshrl.u32 %v1200, 7
    %v1202 = vsub.s32 1, %v1201
    %v1203 = vrot.slane %v1187, %v1202
    %v1206 = vmul.f32 %v1199, %v1193
    %v1207 = vmul.f32 %v1203, %v1194
    %v1208 = vadd.f32 %v1184, %v1206
    %v1209 = vadd.f32 %v1185, %v1207
    %vm1210 = vcmask 1043456
    %v1211 = vsel %vm1210, %v1208, 0.0
    %v1212 = vsel %vm1210, %v1209, 0.0
    %v1213 = vadd.f32 %v1211, %v1212
    %1214 = vadd.xlane.f32.xlu0 %v1213
    %v1215 = vpop.xlane.xlu0 %1214
    %v1216 = vmul.f32 %v1215, 0.00390625
    %v1217 = vsub.f32 %v1208, %v1216
    %v1218 = vsub.f32 %v1209, %v1216
    %v1219 = vmul.f32 %v1217, %v1217
    %v1220 = vmul.f32 %v1218, %v1218
    %v1221 = vsel %vm1210, %v1219, 0.0
    %v1222 = vsel %vm1210, %v1220, 0.0
    %v1223 = vadd.f32 %v1221, %v1222
    %1224 = vadd.xlane.f32.xlu0 %v1223
    %v1225 = vpop.xlane.xlu0 %1224
    %v1226 = vmul.f32 %v1225, 0.00390625
    %v1227 = vadd.f32 %v1226, 1e-05
    %v1228 = vrsqrt.pop %v1227
    %v1229 = vmul.f32 %v1217, %v1228
    %v1230 = vmul.f32 %v1218, %v1228
    %v1231 = vxor.u32 %v1229, 2147483648
    %v1232 = vxor.u32 %v1230, 2147483648
    %v1233 = vmul.f32 %v1231, 1.442695
    %v1234 = vpow.pop %v1233
    %v1235 = vmul.f32 %v1232, 1.442695
    %v1236 = vpow.pop %v1235
    %v1237 = vadd.f32 %v1234, 1.0
    %v1238 = vadd.f32 %v1236, 1.0
    %v1239 = vrcp.pop %v1237
    %v1240 = vmul.f32 1.0, %v1239
    %v1241 = vrcp.pop %v1238
    %v1242 = vmul.f32 1.0, %v1241
    %v1245 = vcombine.low %v1240, %v1242
    %v1247 = vunpack.c.l.s4 1966171168
    %v1248 = vunpack.c.0.s8 %v1247
    %v1249 = vlaneseq
    %v1250 = vshrl.u32 %v1249, 7
    %v1251 = vsub.s32 %v1248, %v1250
    %v1252 = vrot.slane %v1245, %v1251
    %v1253 = vcombine.high %v1252, %v1252
    %v1255 = vunpack.c.l.s4 1966171168
    %v1256 = vunpack.c.0.s8 %v1255
    %v1257 = vlaneseq
    %v1258 = vshrl.u32 %v1257, 7
    %v1259 = vsub.s32 %v1256, %v1258
    %v1260 = vrot.slane %v1252, %v1259
    %v1262 = vunpack.c.l.s4 1966171168
    %v1263 = vunpack.c.0.s8 %v1262
    %v1264 = vlaneseq
    %v1265 = vshrl.u32 %v1264, 7
    %v1266 = vsub.s32 %v1263, %v1265
    %v1267 = vrot.slane %v1253, %v1266
    %v1268 = vcombine.high %v1260, %v1260
    %v1269 = vcombine.high %v1267, %v1267
    %v1270 = vlaneseq
    %v1271 = vshrl.u32 %v1270, 7
    %v1272 = vsub.s32 0, %v1271
    %v1273 = vrot.slane %v1260, %v1272
    %v1274 = vlaneseq
    %v1275 = vshrl.u32 %v1274, 7
    %v1276 = vsub.s32 1, %v1275
    %v1277 = vrot.slane %v1260, %v1276
    %v1278 = vlaneseq
    %v1279 = vshrl.u32 %v1278, 7
    %v1280 = vsub.s32 0, %v1279
    %v1281 = vrot.slane %v1267, %v1280
    %v1282 = vlaneseq
    %v1283 = vshrl.u32 %v1282, 7
    %v1284 = vsub.s32 1, %v1283
    %v1285 = vrot.slane %v1267, %v1284
    %v1290 = vmul.f32 %v62, %v1273
    %v1291 = vmul.f32 %v63, %v1277
    %v1292 = vmul.f32 %v64, %v1273
    %v1293 = vmul.f32 %v65, %v1277
    %v1294 = vmul.f32 %v66, %v1273
    %v1295 = vmul.f32 %v67, %v1277
    %v1296 = vmul.f32 %v68, %v1273
    %v1297 = vmul.f32 %v69, %v1277
    %v1298 = vmul.f32 %v70, %v1281
    %v1299 = vmul.f32 %v71, %v1285
    %v1300 = vmul.f32 %v72, %v1281
    %v1301 = vmul.f32 %v73, %v1285
    %v1302 = vmul.f32 %v74, %v1281
    %v1303 = vmul.f32 %v75, %v1285
    %v1304 = vmul.f32 %v76, %v1281
    %v1305 = vmul.f32 %v77, %v1285
    %v1306 = vadd.f32 %v1290, %v1291
    %1307 = vadd.xlane.f32.xlu0 %v1306
    %v1308 = vpop.xlane.xlu0 %1307
    %v1309 = vadd.f32 %v1292, %v1293
    %1310 = vadd.xlane.f32.xlu0 %v1309
    %v1311 = vpop.xlane.xlu0 %1310
    %v1312 = vadd.f32 %v1294, %v1295
    %1313 = vadd.xlane.f32.xlu0 %v1312
    %v1314 = vpop.xlane.xlu0 %1313
    %v1315 = vadd.f32 %v1296, %v1297
    %1316 = vadd.xlane.f32.xlu0 %v1315
    %v1317 = vpop.xlane.xlu0 %1316
    %v1318 = vadd.f32 %v1298, %v1299
    %1319 = vadd.xlane.f32.xlu0 %v1318
    %v1320 = vpop.xlane.xlu0 %1319
    %v1321 = vadd.f32 %v1300, %v1301
    %1322 = vadd.xlane.f32.xlu0 %v1321
    %v1323 = vpop.xlane.xlu0 %1322
    %v1324 = vadd.f32 %v1302, %v1303
    %1325 = vadd.xlane.f32.xlu0 %v1324
    %v1326 = vpop.xlane.xlu0 %1325
    %v1327 = vadd.f32 %v1304, %v1305
    %1328 = vadd.xlane.f32.xlu0 %v1327
    %v1329 = vpop.xlane.xlu0 %1328
    %v1330 = vlaneseq
    %v1331 = vshrl.u32 %v1330, 7
    %v1332 = vsub.s32 0, %v1331
    %v1333 = vrot.slane %v1268, %v1332
    %v1334 = vlaneseq
    %v1335 = vshrl.u32 %v1334, 7
    %v1336 = vsub.s32 1, %v1335
    %v1337 = vrot.slane %v1268, %v1336
    %v1338 = vlaneseq
    %v1339 = vshrl.u32 %v1338, 7
    %v1340 = vsub.s32 0, %v1339
    %v1341 = vrot.slane %v1269, %v1340
    %v1342 = vlaneseq
    %v1343 = vshrl.u32 %v1342, 7
    %v1344 = vsub.s32 1, %v1343
    %v1345 = vrot.slane %v1269, %v1344
    %v1350 = vmul.f32 %v78, %v1333
    %v1351 = vmul.f32 %v79, %v1337
    %v1352 = vmul.f32 %v80, %v1333
    %v1353 = vmul.f32 %v81, %v1337
    %v1354 = vmul.f32 %v82, %v1333
    %v1355 = vmul.f32 %v83, %v1337
    %v1356 = vmul.f32 %v84, %v1333
    %v1357 = vmul.f32 %v85, %v1337
    %v1358 = vmul.f32 %v86, %v1341
    %v1359 = vmul.f32 %v87, %v1345
    %v1360 = vmul.f32 %v88, %v1341
    %v1361 = vmul.f32 %v89, %v1345
    %v1362 = vmul.f32 %v90, %v1341
    %v1363 = vmul.f32 %v91, %v1345
    %v1364 = vmul.f32 %v92, %v1341
    %v1365 = vmul.f32 %v93, %v1345
    %v1366 = vadd.f32 %v1350, %v1351
    %1367 = vadd.xlane.f32.xlu0 %v1366
    %v1368 = vpop.xlane.xlu0 %1367
    %v1369 = vadd.f32 %v1352, %v1353
    %1370 = vadd.xlane.f32.xlu0 %v1369
    %v1371 = vpop.xlane.xlu0 %1370
    %v1372 = vadd.f32 %v1354, %v1355
    %1373 = vadd.xlane.f32.xlu0 %v1372
    %v1374 = vpop.xlane.xlu0 %1373
    %v1375 = vadd.f32 %v1356, %v1357
    %1376 = vadd.xlane.f32.xlu0 %v1375
    %v1377 = vpop.xlane.xlu0 %1376
    %v1378 = vadd.f32 %v1358, %v1359
    %1379 = vadd.xlane.f32.xlu0 %v1378
    %v1380 = vpop.xlane.xlu0 %1379
    %v1381 = vadd.f32 %v1360, %v1361
    %1382 = vadd.xlane.f32.xlu0 %v1381
    %v1383 = vpop.xlane.xlu0 %1382
    %v1384 = vadd.f32 %v1362, %v1363
    %1385 = vadd.xlane.f32.xlu0 %v1384
    %v1386 = vpop.xlane.xlu0 %1385
    %v1387 = vadd.f32 %v1364, %v1365
    %1388 = vadd.xlane.f32.xlu0 %v1387
    %v1389 = vpop.xlane.xlu0 %1388
    %v1398 = vlaneseq
    %v1399 = vshrl.u32 %v1398, 7
    %v1400 = vsub.s32 %v285, %v1399
    %v1401 = vrot.slane %v1308, %v1400
    %v1402 = vadd.s32 %v285, 4294967288
    %v1403 = vlaneseq
    %v1404 = vshrl.u32 %v1403, 7
    %v1405 = vsub.s32 %v1402, %v1404
    %v1406 = vrot.slane %v1311, %v1405
    %vm1407 = vcmask 130112
    %v1408 = vsel %vm1407, %v1406, %v1401
    %v1409 = vadd.s32 %v285, 4294967280
    %v1410 = vlaneseq
    %v1411 = vshrl.u32 %v1410, 7
    %v1412 = vsub.s32 %v1409, %v1411
    %v1413 = vrot.slane %v1314, %v1412
    %vm1414 = vcmask 195712
    %v1415 = vsel %vm1414, %v1413, %v1408
    %v1416 = vadd.s32 %v285, 4294967272
    %v1417 = vlaneseq
    %v1418 = vshrl.u32 %v1417, 7
    %v1419 = vsub.s32 %v1416, %v1418
    %v1420 = vrot.slane %v1317, %v1419
    %vm1421 = vcmask 261312
    %v1422 = vsel %vm1421, %v1420, %v1415
    %v1423 = vlaneseq
    %v1424 = vshrl.u32 %v1423, 7
    %v1425 = vsub.s32 %v285, %v1424
    %v1426 = vrot.slane %v1320, %v1425
    %v1427 = vlaneseq
    %v1428 = vshrl.u32 %v1427, 7
    %v1429 = vsub.s32 %v1402, %v1428
    %v1430 = vrot.slane %v1323, %v1429
    %v1431 = vsel %vm1407, %v1430, %v1426
    %v1432 = vlaneseq
    %v1433 = vshrl.u32 %v1432, 7
    %v1434 = vsub.s32 %v1409, %v1433
    %v1435 = vrot.slane %v1326, %v1434
    %v1436 = vsel %vm1414, %v1435, %v1431
    %v1437 = vlaneseq
    %v1438 = vshrl.u32 %v1437, 7
    %v1439 = vsub.s32 %v1416, %v1438
    %v1440 = vrot.slane %v1329, %v1439
    %v1441 = vsel %vm1421, %v1440, %v1436
    %v1442 = vsel %vm170, %v1441, %v1422
    %v1452 = vlaneseq
    %v1453 = vshrl.u32 %v1452, 7
    %v1454 = vsub.s32 %v285, %v1453
    %v1455 = vrot.slane %v1368, %v1454
    %v1456 = vlaneseq
    %v1457 = vshrl.u32 %v1456, 7
    %v1458 = vsub.s32 %v1402, %v1457
    %v1459 = vrot.slane %v1371, %v1458
    %v1460 = vsel %vm1407, %v1459, %v1455
    %v1461 = vlaneseq
    %v1462 = vshrl.u32 %v1461, 7
    %v1463 = vsub.s32 %v1409, %v1462
    %v1464 = vrot.slane %v1374, %v1463
    %v1465 = vsel %vm1414, %v1464, %v1460
    %v1466 = vlaneseq
    %v1467 = vshrl.u32 %v1466, 7
    %v1468 = vsub.s32 %v1416, %v1467
    %v1469 = vrot.slane %v1377, %v1468
    %v1470 = vsel %vm1421, %v1469, %v1465
    %v1471 = vlaneseq
    %v1472 = vshrl.u32 %v1471, 7
    %v1473 = vsub.s32 %v285, %v1472
    %v1474 = vrot.slane %v1380, %v1473
    %v1475 = vlaneseq
    %v1476 = vshrl.u32 %v1475, 7
    %v1477 = vsub.s32 %v1402, %v1476
    %v1478 = vrot.slane %v1383, %v1477
    %v1479 = vsel %vm1407, %v1478, %v1474
    %v1480 = vlaneseq
    %v1481 = vshrl.u32 %v1480, 7
    %v1482 = vsub.s32 %v1409, %v1481
    %v1483 = vrot.slane %v1386, %v1482
    %v1484 = vsel %vm1414, %v1483, %v1479
    %v1485 = vlaneseq
    %v1486 = vshrl.u32 %v1485, 7
    %v1487 = vsub.s32 %v1416, %v1486
    %v1488 = vrot.slane %v1389, %v1487
    %v1489 = vsel %vm1421, %v1488, %v1484
    %v1490 = vsel %vm179, %v1489, %v1470
    %v1492 = vsel %vm184, %v1442, %v1490
    %v1493 = vmul.f32 %v1492, 0.00390625
    %v1494 = vld [vmem:[%s4] sm:$0xff]
    %v1495 = vld [vmem:[%s4 + $0x8] sm:$0xff]
    %v1496 = vld [vmem:[%s4 + $0x10] sm:$0xff]
    %v1497 = vld [vmem:[%s4 + $0x18] sm:$0xff]
    %v1498 = vld [vmem:[%s5] sm:$0x1]
    %v1500 = vlaneseq
    %v1501 = vshrl.u32 %v1500, 7
    %v1502 = vsub.s32 0, %v1501
    %v1503 = vrot.slane %v1498, %v1502
    %vm1505 = vcmask 261120
    %v1507 = vsel %vm1505, %v1493, 0
    %1509 = vmatprep.subr.mxu0 0.0
    %1510 = vmatpush1.msra.mxu0 0.0
    %1511 = vmatprep.subr.mxu0 0.0
    %1512 = vmatpush1.msra.mxu0 0.0
    %1513 = vmatprep.subr.mxu0 0.0
    %1514 = vmatpush1.msra.mxu0 0.0
    %1515 = vmatprep.subr.mxu0 0.0
    %1516 = vmatpush1.msra.mxu0 0.0
    %1517 = vmatprep.subr.mxu0 0.0
    %1518 = vmatpush1.msra.mxu0 0.0
    %1519 = vmatprep.subr.mxu0 0.0
    %1520 = vmatpush1.msra.mxu0 0.0
    %1521 = vmatprep.subr.mxu0 0.0
    %1522 = vmatpush1.msra.mxu0 0.0
    %1523 = vmatprep.subr.mxu0 0.0
    %1524 = vmatpush1.msra.mxu0 0.0
    %1525 = vmatprep.subr.mxu0 0.0
    %1526 = vmatpush1.msra.mxu0 0.0
    %1527 = vmatprep.subr.mxu0 0.0
    %1528 = vmatpush1.msra.mxu0 0.0
    %1529 = vmatprep.subr.mxu0 0.0
    %1530 = vmatpush1.msra.mxu0 0.0
    %1531 = vmatprep.subr.mxu0 0.0
    %1532 = vmatpush1.msra.mxu0 0.0
    %1533 = vmatprep.subr.mxu0 0.0
    %1534 = vmatpush1.msra.mxu0 %v1497
    %1535 = vmatprep.subr.mxu0 0.0
    %1536 = vmatpush1.msra.mxu0 %v1496
    %1537 = vmatprep.subr.mxu0 0.0
    %1538 = vmatpush1.msra.mxu0 %v1495
    %1539 = vmatprep.subr.mxu0 0.0
    %1540 = vmatpush1.msra.mxu0 %v1494
    %1541 = vmatprep.subr.mxu0 0.0
    %1542 = vmatpush2.msra.mxu0 0.0
    %1543 = vmatprep.subr.mxu0 0.0
    %1544 = vmatpush2.msra.mxu0 0.0
    %1545 = vmatprep.subr.mxu0 0.0
    %1546 = vmatpush2.msra.mxu0 0.0
    %1547 = vmatprep.subr.mxu0 0.0
    %1548 = vmatpush2.msra.mxu0 0.0
    %1549 = vmatprep.subr.mxu0 0.0
    %1550 = vmatpush2.msra.mxu0 0.0
    %1551 = vmatprep.subr.mxu0 0.0
    %1552 = vmatpush2.msra.mxu0 0.0
    %1553 = vmatprep.subr.mxu0 0.0
    %1554 = vmatpush2.msra.mxu0 0.0
    %1555 = vmatprep.subr.mxu0 0.0
    %1556 = vmatpush2.msra.mxu0 0.0
    %1557 = vmatprep.subr.mxu0 0.0
    %1558 = vmatpush2.msra.mxu0 0.0
    %1559 = vmatprep.subr.mxu0 0.0
    %1560 = vmatpush2.msra.mxu0 0.0
    %1561 = vmatprep.subr.mxu0 0.0
    %1562 = vmatpush2.msra.mxu0 0.0
    %1563 = vmatprep.subr.mxu0 0.0
    %1564 = vmatpush2.msra.mxu0 0.0
    %1565 = vmatprep.subr.mxu0 0.0
    %1566 = vmatpush2.msra.mxu0 0.0
    %1567 = vmatprep.subr.mxu0 0.0
    %1568 = vmatpush2.msra.mxu0 0.0
    %1569 = vmatprep.subr.mxu0 0.0
    %1570 = vmatpush2.msra.mxu0 0.0
    %1571 = vmatprep.subr.mxu0 0.0
    %1572 = vmatpush2.msra.mxu0 0.0
    %1573 = vmatprep.mubr.f32.mxu0 0.0
    %1574 = vmatmul.mubr.f32.gmra.mxu0 %v1507
    %v1575 = vpop.f32.mrf.mxu0
    %v1576 = vadd.f32 %v1503, %v1575
    %v1577 = vpop.f32.mrf.mxu0
    %1578 = vdwg.mxu0
    %v1579 = vmax.f32 %v1576, 0.0
    %v1580 = vld [vmem:[%s6] sm:$0xf]
    %v1581 = vld [vmem:[%s7] sm:$0x1]
    %v1583 = vlaneseq
    %v1584 = vshrl.u32 %v1583, 7
    %v1585 = vsub.s32 0, %v1584
    %v1586 = vrot.slane %v1581, %v1585
    %vm1588 = vcmask 31744
    %v1590 = vsel %vm1588, %v1579, 0
    %v1593 = vsel %vm1210, %v1580, 0
    %1595 = vmatprep.subr.mxu0 0.0
    %1596 = vmatpush1.msra.mxu0 0.0
    %1597 = vmatprep.subr.mxu0 0.0
    %1598 = vmatpush1.msra.mxu0 0.0
    %1599 = vmatprep.subr.mxu0 0.0
    %1600 = vmatpush1.msra.mxu0 0.0
    %1601 = vmatprep.subr.mxu0 0.0
    %1602 = vmatpush1.msra.mxu0 0.0
    %1603 = vmatprep.subr.mxu0 0.0
    %1604 = vmatpush1.msra.mxu0 0.0
    %1605 = vmatprep.subr.mxu0 0.0
    %1606 = vmatpush1.msra.mxu0 0.0
    %1607 = vmatprep.subr.mxu0 0.0
    %1608 = vmatpush1.msra.mxu0 0.0
    %1609 = vmatprep.subr.mxu0 0.0
    %1610 = vmatpush1.msra.mxu0 0.0
    %1611 = vmatprep.subr.mxu0 0.0
    %1612 = vmatpush1.msra.mxu0 0.0
    %1613 = vmatprep.subr.mxu0 0.0
    %1614 = vmatpush1.msra.mxu0 0.0
    %1615 = vmatprep.subr.mxu0 0.0
    %1616 = vmatpush1.msra.mxu0 0.0
    %1617 = vmatprep.subr.mxu0 0.0
    %1618 = vmatpush1.msra.mxu0 0.0
    %1619 = vmatprep.subr.mxu0 0.0
    %1620 = vmatpush1.msra.mxu0 0.0
    %1621 = vmatprep.subr.mxu0 0.0
    %1622 = vmatpush1.msra.mxu0 0.0
    %1623 = vmatprep.subr.mxu0 0.0
    %1624 = vmatpush1.msra.mxu0 0.0
    %1625 = vmatprep.subr.mxu0 0.0
    %1626 = vmatpush1.msra.mxu0 %v1593
    %1627 = vmatprep.subr.mxu0 0.0
    %1628 = vmatpush2.msra.mxu0 0.0
    %1629 = vmatprep.subr.mxu0 0.0
    %1630 = vmatpush2.msra.mxu0 0.0
    %1631 = vmatprep.subr.mxu0 0.0
    %1632 = vmatpush2.msra.mxu0 0.0
    %1633 = vmatprep.subr.mxu0 0.0
    %1634 = vmatpush2.msra.mxu0 0.0
    %1635 = vmatprep.subr.mxu0 0.0
    %1636 = vmatpush2.msra.mxu0 0.0
    %1637 = vmatprep.subr.mxu0 0.0
    %1638 = vmatpush2.msra.mxu0 0.0
    %1639 = vmatprep.subr.mxu0 0.0
    %1640 = vmatpush2.msra.mxu0 0.0
    %1641 = vmatprep.subr.mxu0 0.0
    %1642 = vmatpush2.msra.mxu0 0.0
    %1643 = vmatprep.subr.mxu0 0.0
    %1644 = vmatpush2.msra.mxu0 0.0
    %1645 = vmatprep.subr.mxu0 0.0
    %1646 = vmatpush2.msra.mxu0 0.0
    %1647 = vmatprep.subr.mxu0 0.0
    %1648 = vmatpush2.msra.mxu0 0.0
    %1649 = vmatprep.subr.mxu0 0.0
    %1650 = vmatpush2.msra.mxu0 0.0
    %1651 = vmatprep.subr.mxu0 0.0
    %1652 = vmatpush2.msra.mxu0 0.0
    %1653 = vmatprep.subr.mxu0 0.0
    %1654 = vmatpush2.msra.mxu0 0.0
    %1655 = vmatprep.subr.mxu0 0.0
    %1656 = vmatpush2.msra.mxu0 0.0
    %1657 = vmatprep.subr.mxu0 0.0
    %1658 = vmatpush2.msra.mxu0 0.0
    %1659 = vmatprep.mubr.f32.mxu0 0.0
    %1660 = vmatmul.mubr.f32.gmra.mxu0 %v1590
    %v1661 = vpop.f32.mrf.mxu0
    %v1662 = vadd.f32 %v1586, %v1661
    %v1663 = vpop.f32.mrf.mxu0
    %1664 = vdwg.mxu0
    %v1666 = vrot.slane %v1662, 2
    %v1668 = vsub.f32 %v1662, %v1666
    %v1669 = vxor.u32 %v1668, 2147483648
    %v1670 = vmul.f32 %v1669, 1.442695
    %v1671 = vpow.pop %v1670
    %v1672 = vadd.f32 %v1671, 1.0
    %v1673 = vrcp.pop %v1672
    %v1674 = vmul.f32 1.0, %v1673
    %v1675 = vlaneseq
    %v1676 = vshrl.u32 %v1675, 7
    %v1677 = vsub.s32 0, %v1676
    %v1678 = vrot.slane %v1674, %v1677
    %1680 = vbcast.lane.b32.xlu0 %v1678, 256
    %v1681 = vpop.permute.xlu0 %1680
    %s1683 = sor.u32 256, 8
    %1684 = vbcast.lane.b32.xlu0 %v1678, %s1683
    %v1685 = vpop.permute.xlu0 %1684
    %s1687 = sor.u32 256, 16
    %1688 = vbcast.lane.b32.xlu0 %v1678, %s1687
    %v1689 = vpop.permute.xlu0 %1688
    %s1691 = sor.u32 256, 24
    %1692 = vbcast.lane.b32.xlu0 %v1678, %s1691
    %v1693 = vpop.permute.xlu0 %1692
    %v1694 = vlaneseq
    %v1695 = vshrl.u32 %v1694, 7
    %v1696 = vsub.s32 1, %v1695
    %v1697 = vrot.slane %v1674, %v1696
    %1699 = vbcast.lane.b32.xlu0 %v1697, 256
    %v1700 = vpop.permute.xlu0 %1699
    %s1702 = sor.u32 256, 8
    %1703 = vbcast.lane.b32.xlu0 %v1697, %s1702
    %v1704 = vpop.permute.xlu0 %1703
    %s1706 = sor.u32 256, 16
    %1707 = vbcast.lane.b32.xlu0 %v1697, %s1706
    %v1708 = vpop.permute.xlu0 %1707
    %s1710 = sor.u32 256, 24
    %1711 = vbcast.lane.b32.xlu0 %v1697, %s1710
    %v1712 = vpop.permute.xlu0 %1711
    %v1713 = vmul.f32 %v1681, %v1273
    %v1714 = vmul.f32 %v1681, %v1277
    %v1715 = vmul.f32 %v1685, %v1273
    %v1716 = vmul.f32 %v1685, %v1277
    %v1717 = vmul.f32 %v1689, %v1273
    %v1718 = vmul.f32 %v1689, %v1277
    %v1719 = vmul.f32 %v1693, %v1273
    %v1720 = vmul.f32 %v1693, %v1277
    %v1721 = vmul.f32 %v1700, %v1281
    %v1722 = vmul.f32 %v1700, %v1285
    %v1723 = vmul.f32 %v1704, %v1281
    %v1724 = vmul.f32 %v1704, %v1285
    %v1725 = vmul.f32 %v1708, %v1281
    %v1726 = vmul.f32 %v1708, %v1285
    %v1727 = vmul.f32 %v1712, %v1281
    %v1728 = vmul.f32 %v1712, %v1285
    %v1729 = vmul.f32 %v62, %v1713
    %v1730 = vmul.f32 %v63, %v1714
    %v1731 = vmul.f32 %v64, %v1715
    %v1732 = vmul.f32 %v65, %v1716
    %v1733 = vmul.f32 %v66, %v1717
    %v1734 = vmul.f32 %v67, %v1718
    %v1735 = vmul.f32 %v68, %v1719
    %v1736 = vmul.f32 %v69, %v1720
    %v1737 = vmul.f32 %v70, %v1721
    %v1738 = vmul.f32 %v71, %v1722
    %v1739 = vmul.f32 %v72, %v1723
    %v1740 = vmul.f32 %v73, %v1724
    %v1741 = vmul.f32 %v74, %v1725
    %v1742 = vmul.f32 %v75, %v1726
    %v1743 = vmul.f32 %v76, %v1727
    %v1744 = vmul.f32 %v77, %v1728
    %v1745 = vsub.f32 1.0, %v1681
    %v1746 = vsub.f32 1.0, %v1685
    %v1747 = vsub.f32 1.0, %v1689
    %v1748 = vsub.f32 1.0, %v1693
    %v1749 = vsub.f32 1.0, %v1700
    %v1750 = vsub.f32 1.0, %v1704
    %v1751 = vsub.f32 1.0, %v1708
    %v1752 = vsub.f32 1.0, %v1712
    %v1753 = vmul.f32 %v1745, %v1333
    %v1754 = vmul.f32 %v1745, %v1337
    %v1755 = vmul.f32 %v1746, %v1333
    %v1756 = vmul.f32 %v1746, %v1337
    %v1757 = vmul.f32 %v1747, %v1333
    %v1758 = vmul.f32 %v1747, %v1337
    %v1759 = vmul.f32 %v1748, %v1333
    %v1760 = vmul.f32 %v1748, %v1337
    %v1761 = vmul.f32 %v1749, %v1341
    %v1762 = vmul.f32 %v1749, %v1345
    %v1763 = vmul.f32 %v1750, %v1341
    %v1764 = vmul.f32 %v1750, %v1345
    %v1765 = vmul.f32 %v1751, %v1341
    %v1766 = vmul.f32 %v1751, %v1345
    %v1767 = vmul.f32 %v1752, %v1341
    %v1768 = vmul.f32 %v1752, %v1345
    %v1769 = vmul.f32 %v78, %v1753
    %v1770 = vmul.f32 %v79, %v1754
    %v1771 = vmul.f32 %v80, %v1755
    %v1772 = vmul.f32 %v81, %v1756
    %v1773 = vmul.f32 %v82, %v1757
    %v1774 = vmul.f32 %v83, %v1758
    %v1775 = vmul.f32 %v84, %v1759
    %v1776 = vmul.f32 %v85, %v1760
    %v1777 = vmul.f32 %v86, %v1761
    %v1778 = vmul.f32 %v87, %v1762
    %v1779 = vmul.f32 %v88, %v1763
    %v1780 = vmul.f32 %v89, %v1764
    %v1781 = vmul.f32 %v90, %v1765
    %v1782 = vmul.f32 %v91, %v1766
    %v1783 = vmul.f32 %v92, %v1767
    %v1784 = vmul.f32 %v93, %v1768
    %v1785 = vadd.f32 %v1729, %v1769
    %v1786 = vadd.f32 %v1730, %v1770
    %v1787 = vadd.f32 %v1731, %v1771
    %v1788 = vadd.f32 %v1732, %v1772
    %v1789 = vadd.f32 %v1733, %v1773
    %v1790 = vadd.f32 %v1734, %v1774
    %v1791 = vadd.f32 %v1735, %v1775
    %v1792 = vadd.f32 %v1736, %v1776
    %v1793 = vadd.f32 %v1737, %v1777
    %v1794 = vadd.f32 %v1738, %v1778
    %v1795 = vadd.f32 %v1739, %v1779
    %v1796 = vadd.f32 %v1740, %v1780
    %v1797 = vadd.f32 %v1741, %v1781
    %v1798 = vadd.f32 %v1742, %v1782
    %v1799 = vadd.f32 %v1743, %v1783
    %v1800 = vadd.f32 %v1744, %v1784
    %1801 = vst [vmem:[#allocation9] sm:$0xff] %v1785
    %1802 = vst [vmem:[#allocation9 + $0x8] sm:$0xff] %v1786
    %1803 = vst [vmem:[#allocation9 + $0x10] sm:$0xff] %v1787
    %1804 = vst [vmem:[#allocation9 + $0x18] sm:$0xff] %v1788
    %1805 = vst [vmem:[#allocation9 + $0x20] sm:$0xff] %v1789
    %1806 = vst [vmem:[#allocation9 + $0x28] sm:$0xff] %v1790
    %1807 = vst [vmem:[#allocation9 + $0x30] sm:$0xff] %v1791
    %1808 = vst [vmem:[#allocation9 + $0x38] sm:$0xff] %v1792
    %1809 = vst [vmem:[#allocation9 + $0x40] sm:$0xff] %v1793
    %1810 = vst [vmem:[#allocation9 + $0x48] sm:$0xff] %v1794
    %1811 = vst [vmem:[#allocation9 + $0x50] sm:$0xff] %v1795
    %1812 = vst [vmem:[#allocation9 + $0x58] sm:$0xff] %v1796
    %1813 = vst [vmem:[#allocation9 + $0x60] sm:$0xff] %v1797
    %1814 = vst [vmem:[#allocation9 + $0x68] sm:$0xff] %v1798
    %1815 = vst [vmem:[#allocation9 + $0x70] sm:$0xff] %v1799
    %1816 = vst [vmem:[#allocation9 + $0x78] sm:$0xff] %v1800
    // Predicated region
    $region38: #{tpu_custom_call.1} parent=1 // pred_check
      _
    $region39: #{tpu_custom_call.1} parent=1 // pred_check_branch
      %1818 = sbr.rel (0) target = $region41
    $region40: #{tpu_custom_call.1} parent=1 // pred_region
      %s1820 = ssub.s32 2048, 2048
      %1821 = vsyncadd [#allocation6], %s1820
      %s1822 = sshll.u32 [#allocation9], 4
      %s1823 = int_to_ptr.vmem [resolvable:$true] %s1822
      %1828 = dma.vmem_to_hbm [thread:$0]  %s1823, 2048, %s8, [#allocation6], 256, 256, 16
    $region41: #{tpu_custom_call.1} parent=1 // pred_fallthru
      _
    // Predicated region
    $region42: #{tpu_custom_call.1} parent=1 // pred_check
      _
    $region43: #{tpu_custom_call.1} parent=1 // pred_check_branch
      %1830 = sbr.rel (0) target = $region45
    $region44: #{tpu_custom_call.1} parent=1 // pred_region
      %1831 = dma.done [#allocation6], 2048
    $region45: #{tpu_custom_call.1} parent=1 // pred_fallthru
      _
    %1832 = vsyncpa [#allocation5], 1
    %1833 = vsyncpa [#allocation8], 1
    %1834 = vsyncpa [#allocation6], 1

</llo_original>
